<compile_context>
chip_gen: v6e
topology: v6e:2x2x1
jax: 0.10.0
libtpu: 0.0.40
codegen_flags: <defaults>
</compile_context>

<pallas_src>
import jax
import jax.numpy as jnp
from jax.experimental import pallas as pl
from jax.experimental.pallas import tpu as pltpu

_LN_EPS = 1e-12  # BertLayerNorm eps in the module (effectively zero in f32).


def _layer_norm(x, gamma, beta, eps):
    # E[x^2] - E[x]^2: the two cross-lane reductions are independent.
    mean = jnp.mean(x, axis=-1, keepdims=True)
    mean_sq = jnp.mean(x * x, axis=-1, keepdims=True)
    var = jnp.maximum(mean_sq - mean * mean, 0.0)   # clamp cancellation error
    return (x - mean) * jax.lax.rsqrt(var + eps) * gamma + beta


def _visn_encoder_kernel(feats_ref, boxes_ref, wv_ref, wb_ref, prm_ref, o_ref):
    # Packed params: rows 0..5 = bv, gv, betav, bb, gb, betab (rows 6,7 pad).
    prm = prm_ref[...]                                   # (8, H) f32
    bv, gv, betav = prm[0:1, :], prm[1:2, :], prm[2:3, :]
    bb, gb, betab = prm[3:4, :], prm[4:5, :], prm[5:6, :]

    # visn_fc: bf16 operands on the MXU, f32 accumulation.
    x = jnp.dot(feats_ref[...], wv_ref[...], preferred_element_type=jnp.float32)
    x = _layer_norm(x + bv, gv, betav, _LN_EPS)

    # box_fc: tiny K=4 matmul, kept in f32 (boxes stream is negligible).
    y = jnp.dot(boxes_ref[...].astype(jnp.float32),
                wb_ref[...].astype(jnp.float32),
                preferred_element_type=jnp.float32)
    y = _layer_norm(y + bb, gb, betab, _LN_EPS)

    # Ragged last tile: out-of-range rows carry junk through LN but are masked
    # on store; the var clamp above keeps them finite.
    o_ref[...] = ((x + y) * 0.5).astype(o_ref.dtype)


def _round_up(x, m):
    return ((x + m - 1) // m) * m


def visual_feat_encoder(feats, boxes, params, *, tile_rows=512,
                        matmul_dtype=jnp.bfloat16):
    """Fused LXMERT VisualFeatEncoder forward.

    feats: (..., Df), boxes: (..., Dp) -> out: (..., H)
    params: dict with wv (Df,H), bv/gv/betav (H,), wb (Dp,H), bb/gb/betab (H,)

    The feats @ Wv matmul runs with `matmul_dtype` (bf16) operands and f32 MXU
    accumulation: ~1e-3-level error vs a pure-f32 reference, acceptable for
    inference and worth ~2x HBM traffic on the dominant stream.
    """
    # TODO(synk): nn.Dropout is identity at inference; training-mode RNG
    # dropout is not implemented here.
    wv, bv, gv, betav = params["wv"], params["bv"], params["gv"], params["betav"]
    wb, bb, gb, betab = params["wb"], params["bb"], params["gb"], params["betab"]

    lead = feats.shape[:-1]
    assert boxes.shape[:-1] == lead, "feats/boxes leading dims must match"
    Df = feats.shape[-1]
    Dp = boxes.shape[-1]
    H = wv.shape[-1]
    out_dtype = feats.dtype

    # bf16-stream the dominant HBM traffic (feats + Wv); boxes/Wb stay f32.
    f2 = feats.reshape(-1, Df).astype(matmul_dtype)
    wv_m = wv.astype(matmul_dtype)
    b2 = boxes.reshape(-1, Dp).astype(jnp.float32)
    wb_m = wb.astype(jnp.float32)
    R = f2.shape[0]

    # Pack the six bias/LN vectors into one sublane-aligned (8, H) f32 block.
    prm = jnp.stack([bv, gv, betav, bb, gb, betab], axis=0).astype(jnp.float32)
    prm = jnp.pad(prm, ((0, 2), (0, 0)))

    # Row tile: biggest block up to tile_rows, but with >= 2 grid steps when
    # there is enough work so v7x can shard the row axis across both TCs.
    # No host-side padding of activations: the ragged last block is handled by
    # the grid (out-of-range rows are masked on store).
    if R <= 16:
        tr = R                                          # full-dim block, legal
    else:
        tr = max(8, min(_round_up(tile_rows, 8), _round_up(pl.cdiv(R, 2), 8)))
    grid_r = pl.cdiv(R, tr)

    def row_spec(shape):
        return pl.BlockSpec(shape, lambda i: (i, 0))

    def full_spec(shape):
        # Constant block index -> loaded once, VMEM-resident across the grid.
        # TODO(synk): pipeline_mode=pl.Buffered(1) would drop the redundant
        # second VMEM window on these constants; skipped (second-order saving).
        return pl.BlockSpec(shape, lambda i: (0, 0))

    out = pl.pallas_call(
        _visn_encoder_kernel,
        out_shape=jax.ShapeDtypeStruct((R, H), out_dtype),
        grid=(grid_r,),
        in_specs=[
            row_spec((tr, Df)),        # feats tile (bf16 stream)
            row_spec((tr, Dp)),        # boxes tile
            full_spec((Df, H)),        # Wv (bf16, VMEM-resident)
            full_spec((Dp, H)),        # Wb (f32, VMEM-resident)
            full_spec((8, H)),         # packed bv/gv/betav/bb/gb/betab
        ],
        out_specs=row_spec((tr, H)),
        compiler_params=pltpu.CompilerParams(
            dimension_semantics=("parallel",),   # megacore-shard rows on v7x
            vmem_limit_bytes=32 * 1024 * 1024,   # safe headroom on v5e/v6e/v7x
        ),
    )(f2, b2, wv_m, wb_m, prm)

    return out.reshape(*lead, H)


if __name__ == "__main__":
    key = jax.random.PRNGKey(0)
    ks = jax.random.split(key, 10)

    # Small shapes consistent with the module: batch=2, 8 boxes per image,
    # visual_feat_dim=2048, visual_pos_dim=4, hidden_size=128.
    B, N = 2, 8
    feat_dim, pos_dim, hidden = 2048, 4, 128

    feats = jax.random.normal(ks[0], (B, N, feat_dim), jnp.float32)
    boxes = jax.random.uniform(ks[1], (B, N, pos_dim), jnp.float32)

    params = {
        "wv": 0.02 * jax.random.normal(ks[2], (feat_dim, hidden), jnp.float32),
        "bv": 0.02 * jax.random.normal(ks[3], (hidden,), jnp.float32),
        "gv": 1.0 + 0.1 * jax.random.normal(ks[4], (hidden,), jnp.float32),
        "betav": 0.02 * jax.random.normal(ks[5], (hidden,), jnp.float32),
        "wb": 0.02 * jax.random.normal(ks[6], (pos_dim, hidden), jnp.float32),
        "bb": 0.02 * jax.random.normal(ks[7], (hidden,), jnp.float32),
        "gb": 1.0 + 0.1 * jax.random.normal(ks[8], (hidden,), jnp.float32),
        "betab": 0.02 * jax.random.normal(ks[9], (hidden,), jnp.float32),
    }

    out = visual_feat_encoder(feats, boxes, params)
    jax.block_until_ready(out)

    # Pure-JAX reference.  The visn matmul reference uses the same bf16
    # operands the kernel streams, so the check isolates kernel bugs from the
    # documented bf16 quantization (~1e-3 vs an all-f32 forward).
    def ln(x, g, b):
        m = jnp.mean(x, axis=-1, keepdims=True)
        v = jnp.mean((x - m) ** 2, axis=-1, keepdims=True)
        return (x - m) * jax.lax.rsqrt(v + _LN_EPS) * g + b

    hp = jax.lax.Precision.HIGHEST
    f_bf = feats.astype(jnp.bfloat16).astype(jnp.float32)
    wv_bf = params["wv"].astype(jnp.bfloat16).astype(jnp.float32)
    x_ref = jnp.einsum("bnd,dh->bnh", f_bf, wv_bf, precision=hp) + params["bv"]
    x_ref = ln(x_ref, params["gv"], params["betav"])
    y_ref = jnp.einsum("bnd,dh->bnh", boxes, params["wb"], precision=hp) + params["bb"]
    y_ref = ln(y_ref, params["gb"], params["betab"])
    ref = (x_ref + y_ref) * 0.5

    assert out.shape == (B, N, hidden)
    err = float(jnp.max(jnp.abs(out - ref)))
    assert jnp.allclose(out, ref, atol=2e-3, rtol=2e-3), f"max |err| = {err}"

    print("KERNEL_OK")
</pallas_src>

<mosaic_0001>
module attributes {stable_mosaic.version = 11 : i64} {
  func.func @_visn_encoder_kernel(%arg0: i32, %arg1: memref<16x2048xbf16, #tpu.memory_space<vmem>>, %arg2: memref<16x4xf32, #tpu.memory_space<vmem>>, %arg3: memref<2048x128xbf16, #tpu.memory_space<vmem>>, %arg4: memref<4x128xf32, #tpu.memory_space<vmem>>, %arg5: memref<8x128xf32, #tpu.memory_space<vmem>>, %arg6: memref<16x128xf32, #tpu.memory_space<vmem>>) attributes {dimension_semantics = [#tpu.dimension_semantics<parallel>], iteration_bounds = array<i64: 1>, scalar_prefetch = 0 : i64, scratch_operands = 0 : i64, tpu.core_type = #tpu.core_type<tc>, window_params = [{transform_indices = @transform_0, window_bounds = array<i64: 16, 2048>}, {transform_indices = @transform_1, window_bounds = array<i64: 16, 4>}, {pipeline_mode = #tpu.pipeline_mode<synchronous>, transform_indices = @transform_2, window_bounds = array<i64: 2048, 128>}, {pipeline_mode = #tpu.pipeline_mode<synchronous>, transform_indices = @transform_3, window_bounds = array<i64: 4, 128>}, {pipeline_mode = #tpu.pipeline_mode<synchronous>, transform_indices = @transform_4, window_bounds = array<i64: 8, 128>}, {transform_indices = @transform_5, window_bounds = array<i64: 16, 128>}]} {
    %c0 = arith.constant 0 : index
    %c0_0 = arith.constant 0 : index
    %0 = vector.load %arg5[%c0, %c0_0] : memref<8x128xf32, #tpu.memory_space<vmem>>, vector<8x128xf32>
    %1 = vector.extract_strided_slice %0 {offsets = [0, 0], sizes = [1, 128], strides = [1, 1]} : vector<8x128xf32> to vector<1x128xf32>
    %2 = vector.extract_strided_slice %0 {offsets = [1, 0], sizes = [1, 128], strides = [1, 1]} : vector<8x128xf32> to vector<1x128xf32>
    %3 = vector.extract_strided_slice %0 {offsets = [2, 0], sizes = [1, 128], strides = [1, 1]} : vector<8x128xf32> to vector<1x128xf32>
    %4 = vector.extract_strided_slice %0 {offsets = [3, 0], sizes = [1, 128], strides = [1, 1]} : vector<8x128xf32> to vector<1x128xf32>
    %5 = vector.extract_strided_slice %0 {offsets = [4, 0], sizes = [1, 128], strides = [1, 1]} : vector<8x128xf32> to vector<1x128xf32>
    %6 = vector.extract_strided_slice %0 {offsets = [5, 0], sizes = [1, 128], strides = [1, 1]} : vector<8x128xf32> to vector<1x128xf32>
    %c0_1 = arith.constant 0 : index
    %c0_2 = arith.constant 0 : index
    %7 = vector.load %arg1[%c0_1, %c0_2] : memref<16x2048xbf16, #tpu.memory_space<vmem>>, vector<16x2048xbf16>
    %c0_3 = arith.constant 0 : index
    %c0_4 = arith.constant 0 : index
    %8 = vector.load %arg3[%c0_3, %c0_4] : memref<2048x128xbf16, #tpu.memory_space<vmem>>, vector<2048x128xbf16>
    %cst = arith.constant dense<0.000000e+00> : vector<16x128xf32>
    %9 = tpu.matmul %7, %8, %cst {dimension_numbers = #tpu.dot_dimension_numbers<[1], [0], [0], [1], [0, 0, 1, 1], [], []>} : vector<16x2048xbf16>, vector<2048x128xbf16>, vector<16x128xf32> -> vector<16x128xf32>
    %10 = vector.broadcast %1 : vector<1x128xf32> to vector<16x128xf32>
    %11 = arith.addf %9, %10 : vector<16x128xf32>
    %cst_5 = arith.constant dense<0.000000e+00> : vector<16xf32>
    %12 = vector.multi_reduction <add>, %11, %cst_5 [1] : vector<16x128xf32> to vector<16xf32>
    %13 = vector.shape_cast %12 : vector<16xf32> to vector<16x1xf32>
    %cst_6 = arith.constant 1.280000e+02 : f32
    %14 = vector.broadcast %cst_6 : f32 to vector<16x1xf32>
    %15 = arith.divf %13, %14 : vector<16x1xf32>
    %16 = arith.mulf %11, %11 : vector<16x128xf32>
    %cst_7 = arith.constant dense<0.000000e+00> : vector<16xf32>
    %17 = vector.multi_reduction <add>, %16, %cst_7 [1] : vector<16x128xf32> to vector<16xf32>
    %18 = vector.shape_cast %17 : vector<16xf32> to vector<16x1xf32>
    %cst_8 = arith.constant 1.280000e+02 : f32
    %19 = vector.broadcast %cst_8 : f32 to vector<16x1xf32>
    %20 = arith.divf %18, %19 : vector<16x1xf32>
    %21 = arith.mulf %15, %15 : vector<16x1xf32>
    %22 = arith.subf %20, %21 : vector<16x1xf32>
    %cst_9 = arith.constant 0.000000e+00 : f32
    %23 = vector.broadcast %cst_9 : f32 to vector<16x1xf32>
    %24 = arith.maximumf %22, %23 : vector<16x1xf32>
    %25 = vector.broadcast %15 : vector<16x1xf32> to vector<16x128xf32>
    %26 = arith.subf %11, %25 : vector<16x128xf32>
    %cst_10 = arith.constant 9.99999996E-13 : f32
    %27 = vector.broadcast %cst_10 : f32 to vector<16x1xf32>
    %28 = arith.addf %24, %27 : vector<16x1xf32>
    %29 = math.rsqrt %28 : vector<16x1xf32>
    %30 = vector.broadcast %29 : vector<16x1xf32> to vector<16x128xf32>
    %31 = arith.mulf %26, %30 : vector<16x128xf32>
    %32 = vector.broadcast %2 : vector<1x128xf32> to vector<16x128xf32>
    %33 = arith.mulf %31, %32 : vector<16x128xf32>
    %34 = vector.broadcast %3 : vector<1x128xf32> to vector<16x128xf32>
    %35 = arith.addf %33, %34 : vector<16x128xf32>
    %c0_11 = arith.constant 0 : index
    %c0_12 = arith.constant 0 : index
    %36 = vector.load %arg2[%c0_11, %c0_12] : memref<16x4xf32, #tpu.memory_space<vmem>>, vector<16x4xf32>
    %c0_13 = arith.constant 0 : index
    %c0_14 = arith.constant 0 : index
    %37 = vector.load %arg4[%c0_13, %c0_14] : memref<4x128xf32, #tpu.memory_space<vmem>>, vector<4x128xf32>
    %cst_15 = arith.constant dense<0.000000e+00> : vector<16x128xf32>
    %38 = tpu.matmul %36, %37, %cst_15 {dimension_numbers = #tpu.dot_dimension_numbers<[1], [0], [0], [1], [0, 0, 1, 1], [], []>} : vector<16x4xf32>, vector<4x128xf32>, vector<16x128xf32> -> vector<16x128xf32>
    %39 = vector.broadcast %4 : vector<1x128xf32> to vector<16x128xf32>
    %40 = arith.addf %38, %39 : vector<16x128xf32>
    %cst_16 = arith.constant dense<0.000000e+00> : vector<16xf32>
    %41 = vector.multi_reduction <add>, %40, %cst_16 [1] : vector<16x128xf32> to vector<16xf32>
    %42 = vector.shape_cast %41 : vector<16xf32> to vector<16x1xf32>
    %cst_17 = arith.constant 1.280000e+02 : f32
    %43 = vector.broadcast %cst_17 : f32 to vector<16x1xf32>
    %44 = arith.divf %42, %43 : vector<16x1xf32>
    %45 = arith.mulf %40, %40 : vector<16x128xf32>
    %cst_18 = arith.constant dense<0.000000e+00> : vector<16xf32>
    %46 = vector.multi_reduction <add>, %45, %cst_18 [1] : vector<16x128xf32> to vector<16xf32>
    %47 = vector.shape_cast %46 : vector<16xf32> to vector<16x1xf32>
    %cst_19 = arith.constant 1.280000e+02 : f32
    %48 = vector.broadcast %cst_19 : f32 to vector<16x1xf32>
    %49 = arith.divf %47, %48 : vector<16x1xf32>
    %50 = arith.mulf %44, %44 : vector<16x1xf32>
    %51 = arith.subf %49, %50 : vector<16x1xf32>
    %cst_20 = arith.constant 0.000000e+00 : f32
    %52 = vector.broadcast %cst_20 : f32 to vector<16x1xf32>
    %53 = arith.maximumf %51, %52 : vector<16x1xf32>
    %54 = vector.broadcast %44 : vector<16x1xf32> to vector<16x128xf32>
    %55 = arith.subf %40, %54 : vector<16x128xf32>
    %cst_21 = arith.constant 9.99999996E-13 : f32
    %56 = vector.broadcast %cst_21 : f32 to vector<16x1xf32>
    %57 = arith.addf %53, %56 : vector<16x1xf32>
    %58 = math.rsqrt %57 : vector<16x1xf32>
    %59 = vector.broadcast %58 : vector<16x1xf32> to vector<16x128xf32>
    %60 = arith.mulf %55, %59 : vector<16x128xf32>
    %61 = vector.broadcast %5 : vector<1x128xf32> to vector<16x128xf32>
    %62 = arith.mulf %60, %61 : vector<16x128xf32>
    %63 = vector.broadcast %6 : vector<1x128xf32> to vector<16x128xf32>
    %64 = arith.addf %62, %63 : vector<16x128xf32>
    %65 = arith.addf %35, %64 : vector<16x128xf32>
    %cst_22 = arith.constant 5.000000e-01 : f32
    %66 = vector.broadcast %cst_22 : f32 to vector<16x128xf32>
    %67 = arith.mulf %65, %66 : vector<16x128xf32>
    %c0_23 = arith.constant 0 : index
    %c0_24 = arith.constant 0 : index
    %68 = vector.load %arg6[%c0_23, %c0_24] : memref<16x128xf32, #tpu.memory_space<vmem>>, vector<16x128xf32>
    tpu.vector_store %arg6[%c0_23, %c0_24], %67 {strides = array<i32>} : memref<16x128xf32, #tpu.memory_space<vmem>>, vector<16x128xf32>,
    return
  }
  func.func @transform_0(%arg0: i32) -> (i32, i32) {
    %c0_i32 = arith.constant 0 : i32
    %c0_i32_0 = arith.constant 0 : i32
    return %arg0, %c0_i32 : i32, i32
  }
  func.func @transform_1(%arg0: i32) -> (i32, i32) {
    %c0_i32 = arith.constant 0 : i32
    %c0_i32_0 = arith.constant 0 : i32
    return %arg0, %c0_i32 : i32, i32
  }
  func.func @transform_2(%arg0: i32) -> (i32, i32) {
    %c0_i32 = arith.constant 0 : i32
    %c0_i32_0 = arith.constant 0 : i32
    %c0_i32_1 = arith.constant 0 : i32
    return %c0_i32, %c0_i32_0 : i32, i32
  }
  func.func @transform_3(%arg0: i32) -> (i32, i32) {
    %c0_i32 = arith.constant 0 : i32
    %c0_i32_0 = arith.constant 0 : i32
    %c0_i32_1 = arith.constant 0 : i32
    return %c0_i32, %c0_i32_0 : i32, i32
  }
  func.func @transform_4(%arg0: i32) -> (i32, i32) {
    %c0_i32 = arith.constant 0 : i32
    %c0_i32_0 = arith.constant 0 : i32
    %c0_i32_1 = arith.constant 0 : i32
    return %c0_i32, %c0_i32_0 : i32, i32
  }
  func.func @transform_5(%arg0: i32) -> (i32, i32) {
    %c0_i32 = arith.constant 0 : i32
    %c0_i32_0 = arith.constant 0 : i32
    return %arg0, %c0_i32 : i32, i32
  }
}

</mosaic_0001>

<llo_original>
// kernel: tpu_custom_call.1
$region0: #{tpu_custom_call.1}
  #allocation0 [shape = 'u32[]', space=smem, size = 0x4, offset = 0x4, fixed_abs, tag = 'smem constant byte address 0x4 - core index']
  #allocation1 [shape = 'u32[144,128]{1,0:T(1,128)}', space=vmem, size = 0x12000, scoped, tag = 'internal scratch']
  %s0 = inlined_call_operand.hbm [shape: bf16[16,2048], index: 0, kind: input, shape index: {}]
  %s1 = inlined_call_operand.vmem [shape: f32[16,4], index: 1, kind: input, shape index: {}]
  %s2 = inlined_call_operand.hbm [shape: bf16[2048,128], index: 2, kind: input, shape index: {}]
  %s3 = inlined_call_operand.vmem [shape: f32[4,128], index: 3, kind: input, shape index: {}]
  %s4 = inlined_call_operand.vmem [shape: f32[8,128], index: 4, kind: input, shape index: {}]
  %s5 = inlined_call_operand.hbm [shape: f32[16,128], index: 5, kind: output, shape index: {}]
  %s6 = sld [smem:[#allocation0]]
  $region38: #{tpu_custom_call.1} parent=0
    _
  %s8 = ssub.s32 1, %s6
  %s9 = scalar_select 0, %s8, %s6
  $region1: #{tpu_custom_call.1} parent=0
    #allocation2 [shape = 'u8[65536]{0}', space=vmem, size = 0x10000, scoped, tag = 'input window, operand 0, single buffered']
    #allocation3 [shape = 's32[1]{0}', space=sflag, size = 0x4, scoped, tag = 'scoped memory for tpu_custom_call.1']
    #allocation4 [shape = 's32[1]{0}', space=sflag, size = 0x4, scoped, tag = 'scoped memory for tpu_custom_call.1']
    #allocation5 [shape = 'u8[524288]{0}', space=vmem, size = 0x80000, scoped, tag = 'input window, operand 2, single buffered']
    #allocation6 [shape = 's32[1]{0}', space=sflag, size = 0x4, scoped, tag = 'scoped memory for tpu_custom_call.1']
    #allocation7 [shape = 'u8[8192]{0}', space=vmem, size = 0x2000, scoped, tag = 'output window, operand 0, single buffered']
    %10 = vsyncpa [#allocation3], 0
    %11 = vsyncpa [#allocation6], 0
    %12 = vsyncpa [#allocation4], 0
    // Predicated region
    $region2: #{tpu_custom_call.1} parent=1 // pred_check
      _
    $region3: #{tpu_custom_call.1} parent=1 // pred_check_branch
      %14 = sbr.rel (0) target = $region5
    $region4: #{tpu_custom_call.1} parent=1 // pred_region
      %s16 = ssub.s32 2048, 2048
      %17 = vsyncadd [#allocation3], %s16
      %s18 = sshll.u32 [#allocation2], 4
      %s19 = int_to_ptr.vmem [resolvable:$true] %s18
      %24 = dma.hbm_to_vmem [thread:$0]  %s0, 2048, %s19, [#allocation3], 1024, 1024, 64
    $region5: #{tpu_custom_call.1} parent=1 // pred_fallthru
      _
    // Predicated region
    $region6: #{tpu_custom_call.1} parent=1 // pred_check
      _
    $region7: #{tpu_custom_call.1} parent=1 // pred_check_branch
      %26 = sbr.rel (0) target = $region9
    $region8: #{tpu_custom_call.1} parent=1 // pred_region
      _
    $region9: #{tpu_custom_call.1} parent=1 // pred_fallthru
      _
    // Predicated region
    $region10: #{tpu_custom_call.1} parent=1 // pred_check
      _
    $region11: #{tpu_custom_call.1} parent=1 // pred_check_branch
      %28 = sbr.rel (0) target = $region13
    $region12: #{tpu_custom_call.1} parent=1 // pred_region
      %s30 = ssub.s32 16384, 16384
      %31 = vsyncadd [#allocation6], %s30
      %s32 = sshll.u32 [#allocation5], 4
      %s33 = int_to_ptr.vmem [resolvable:$true] %s32
      %38 = dma.hbm_to_vmem [thread:$0]  %s2, 16384, %s33, [#allocation6], 64, 64, 4
    $region13: #{tpu_custom_call.1} parent=1 // pred_fallthru
      _
    // Predicated region
    $region14: #{tpu_custom_call.1} parent=1 // pred_check
      _
    $region15: #{tpu_custom_call.1} parent=1 // pred_check_branch
      %40 = sbr.rel (0) target = $region17
    $region16: #{tpu_custom_call.1} parent=1 // pred_region
      _
    $region17: #{tpu_custom_call.1} parent=1 // pred_fallthru
      _
    // Predicated region
    $region18: #{tpu_custom_call.1} parent=1 // pred_check
      _
    $region19: #{tpu_custom_call.1} parent=1 // pred_check_branch
      %42 = sbr.rel (0) target = $region21
    $region20: #{tpu_custom_call.1} parent=1 // pred_region
      _
    $region21: #{tpu_custom_call.1} parent=1 // pred_fallthru
      _
    // Predicated region
    $region22: #{tpu_custom_call.1} parent=1 // pred_check
      _
    $region23: #{tpu_custom_call.1} parent=1 // pred_check_branch
      %44 = sbr.rel (0) target = $region25
    $region24: #{tpu_custom_call.1} parent=1 // pred_region
      %45 = dma.done [#allocation3], 2048
    $region25: #{tpu_custom_call.1} parent=1 // pred_fallthru
      _
    // Predicated region
    $region26: #{tpu_custom_call.1} parent=1 // pred_check
      _
    $region27: #{tpu_custom_call.1} parent=1 // pred_check_branch
      %47 = sbr.rel (0) target = $region29
    $region28: #{tpu_custom_call.1} parent=1 // pred_region
      %48 = dma.done [#allocation6], 16384
    $region29: #{tpu_custom_call.1} parent=1 // pred_fallthru
      _
    %v50 = vld [vmem:[%s4] sm:$0xff]
    %v51 = vld [vmem:[#allocation2] sm:$0xff]
    %v52 = vld [vmem:[#allocation2 + $0x8] sm:$0xff]
    %v53 = vld [vmem:[#allocation2 + $0x10] sm:$0xff]
    %v54 = vld [vmem:[#allocation2 + $0x18] sm:$0xff]
    %v55 = vld [vmem:[#allocation2 + $0x20] sm:$0xff]
    %v56 = vld [vmem:[#allocation2 + $0x28] sm:$0xff]
    %v57 = vld [vmem:[#allocation2 + $0x30] sm:$0xff]
    %v58 = vld [vmem:[#allocation2 + $0x38] sm:$0xff]
    %v59 = vld [vmem:[#allocation2 + $0x40] sm:$0xff]
    %v60 = vld [vmem:[#allocation2 + $0x48] sm:$0xff]
    %v61 = vld [vmem:[#allocation2 + $0x50] sm:$0xff]
    %v62 = vld [vmem:[#allocation2 + $0x58] sm:$0xff]
    %v63 = vld [vmem:[#allocation2 + $0x60] sm:$0xff]
    %v64 = vld [vmem:[#allocation2 + $0x68] sm:$0xff]
    %v65 = vld [vmem:[#allocation2 + $0x70] sm:$0xff]
    %v66 = vld [vmem:[#allocation2 + $0x78] sm:$0xff]
    %v67 = vld [vmem:[#allocation5] sm:$0xf]
    %v68 = vld [vmem:[#allocation5 + $0x4] sm:$0xf]
    %v69 = vld [vmem:[#allocation5 + $0x8] sm:$0xf]
    %v70 = vld [vmem:[#allocation5 + $0xc] sm:$0xf]
    %v71 = vld [vmem:[#allocation5 + $0x10] sm:$0xf]
    %v72 = vld [vmem:[#allocation5 + $0x14] sm:$0xf]
    %v73 = vld [vmem:[#allocation5 + $0x18] sm:$0xf]
    %v74 = vld [vmem:[#allocation5 + $0x1c] sm:$0xf]
    %v75 = vld [vmem:[#allocation5 + $0x20] sm:$0xf]
    %v76 = vld [vmem:[#allocation5 + $0x24] sm:$0xf]
    %v77 = vld [vmem:[#allocation5 + $0x28] sm:$0xf]
    %v78 = vld [vmem:[#allocation5 + $0x2c] sm:$0xf]
    %v79 = vld [vmem:[#allocation5 + $0x30] sm:$0xf]
    %v80 = vld [vmem:[#allocation5 + $0x34] sm:$0xf]
    %v81 = vld [vmem:[#allocation5 + $0x38] sm:$0xf]
    %v82 = vld [vmem:[#allocation5 + $0x3c] sm:$0xf]
    %v83 = vld [vmem:[#allocation5 + $0x40] sm:$0xf]
    %v84 = vld [vmem:[#allocation5 + $0x44] sm:$0xf]
    %v85 = vld [vmem:[#allocation5 + $0x48] sm:$0xf]
    %v86 = vld [vmem:[#allocation5 + $0x4c] sm:$0xf]
    %v87 = vld [vmem:[#allocation5 + $0x50] sm:$0xf]
    %v88 = vld [vmem:[#allocation5 + $0x54] sm:$0xf]
    %v89 = vld [vmem:[#allocation5 + $0x58] sm:$0xf]
    %v90 = vld [vmem:[#allocation5 + $0x5c] sm:$0xf]
    %v91 = vld [vmem:[#allocation5 + $0x60] sm:$0xf]
    %v92 = vld [vmem:[#allocation5 + $0x64] sm:$0xf]
    %v93 = vld [vmem:[#allocation5 + $0x68] sm:$0xf]
    %v94 = vld [vmem:[#allocation5 + $0x6c] sm:$0xf]
    %v95 = vld [vmem:[#allocation5 + $0x70] sm:$0xf]
    %v96 = vld [vmem:[#allocation5 + $0x74] sm:$0xf]
    %v97 = vld [vmem:[#allocation5 + $0x78] sm:$0xf]
    %v98 = vld [vmem:[#allocation5 + $0x7c] sm:$0xf]
    %v99 = vld [vmem:[#allocation5 + $0x80] sm:$0xf]
    %v100 = vld [vmem:[#allocation5 + $0x84] sm:$0xf]
    %v101 = vld [vmem:[#allocation5 + $0x88] sm:$0xf]
    %v102 = vld [vmem:[#allocation5 + $0x8c] sm:$0xf]
    %v103 = vld [vmem:[#allocation5 + $0x90] sm:$0xf]
    %v104 = vld [vmem:[#allocation5 + $0x94] sm:$0xf]
    %v105 = vld [vmem:[#allocation5 + $0x98] sm:$0xf]
    %v106 = vld [vmem:[#allocation5 + $0x9c] sm:$0xf]
    %v107 = vld [vmem:[#allocation5 + $0xa0] sm:$0xf]
    %v108 = vld [vmem:[#allocation5 + $0xa4] sm:$0xf]
    %v109 = vld [vmem:[#allocation5 + $0xa8] sm:$0xf]
    %v110 = vld [vmem:[#allocation5 + $0xac] sm:$0xf]
    %v111 = vld [vmem:[#allocation5 + $0xb0] sm:$0xf]
    %v112 = vld [vmem:[#allocation5 + $0xb4] sm:$0xf]
    %v113 = vld [vmem:[#allocation5 + $0xb8] sm:$0xf]
    %v114 = vld [vmem:[#allocation5 + $0xbc] sm:$0xf]
    %v115 = vld [vmem:[#allocation5 + $0xc0] sm:$0xf]
    %v116 = vld [vmem:[#allocation5 + $0xc4] sm:$0xf]
    %v117 = vld [vmem:[#allocation5 + $0xc8] sm:$0xf]
    %v118 = vld [vmem:[#allocation5 + $0xcc] sm:$0xf]
    %v119 = vld [vmem:[#allocation5 + $0xd0] sm:$0xf]
    %v120 = vld [vmem:[#allocation5 + $0xd4] sm:$0xf]
    %v121 = vld [vmem:[#allocation5 + $0xd8] sm:$0xf]
    %v122 = vld [vmem:[#allocation5 + $0xdc] sm:$0xf]
    %v123 = vld [vmem:[#allocation5 + $0xe0] sm:$0xf]
    %v124 = vld [vmem:[#allocation5 + $0xe4] sm:$0xf]
    %v125 = vld [vmem:[#allocation5 + $0xe8] sm:$0xf]
    %v126 = vld [vmem:[#allocation5 + $0xec] sm:$0xf]
    %v127 = vld [vmem:[#allocation5 + $0xf0] sm:$0xf]
    %v128 = vld [vmem:[#allocation5 + $0xf4] sm:$0xf]
    %v129 = vld [vmem:[#allocation5 + $0xf8] sm:$0xf]
    %v130 = vld [vmem:[#allocation5 + $0xfc] sm:$0xf]
    %v131 = vld [vmem:[#allocation5 + $0x100] sm:$0xf]
    %v132 = vld [vmem:[#allocation5 + $0x104] sm:$0xf]
    %v133 = vld [vmem:[#allocation5 + $0x108] sm:$0xf]
    %v134 = vld [vmem:[#allocation5 + $0x10c] sm:$0xf]
    %v135 = vld [vmem:[#allocation5 + $0x110] sm:$0xf]
    %v136 = vld [vmem:[#allocation5 + $0x114] sm:$0xf]
    %v137 = vld [vmem:[#allocation5 + $0x118] sm:$0xf]
    %v138 = vld [vmem:[#allocation5 + $0x11c] sm:$0xf]
    %v139 = vld [vmem:[#allocation5 + $0x120] sm:$0xf]
    %v140 = vld [vmem:[#allocation5 + $0x124] sm:$0xf]
    %v141 = vld [vmem:[#allocation5 + $0x128] sm:$0xf]
    %v142 = vld [vmem:[#allocation5 + $0x12c] sm:$0xf]
    %v143 = vld [vmem:[#allocation5 + $0x130] sm:$0xf]
    %v144 = vld [vmem:[#allocation5 + $0x134] sm:$0xf]
    %v145 = vld [vmem:[#allocation5 + $0x138] sm:$0xf]
    %v146 = vld [vmem:[#allocation5 + $0x13c] sm:$0xf]
    %v147 = vld [vmem:[#allocation5 + $0x140] sm:$0xf]
    %v148 = vld [vmem:[#allocation5 + $0x144] sm:$0xf]
    %v149 = vld [vmem:[#allocation5 + $0x148] sm:$0xf]
    %v150 = vld [vmem:[#allocation5 + $0x14c] sm:$0xf]
    %v151 = vld [vmem:[#allocation5 + $0x150] sm:$0xf]
    %v152 = vld [vmem:[#allocation5 + $0x154] sm:$0xf]
    %v153 = vld [vmem:[#allocation5 + $0x158] sm:$0xf]
    %v154 = vld [vmem:[#allocation5 + $0x15c] sm:$0xf]
    %v155 = vld [vmem:[#allocation5 + $0x160] sm:$0xf]
    %v156 = vld [vmem:[#allocation5 + $0x164] sm:$0xf]
    %v157 = vld [vmem:[#allocation5 + $0x168] sm:$0xf]
    %v158 = vld [vmem:[#allocation5 + $0x16c] sm:$0xf]
    %v159 = vld [vmem:[#allocation5 + $0x170] sm:$0xf]
    %v160 = vld [vmem:[#allocation5 + $0x174] sm:$0xf]
    %v161 = vld [vmem:[#allocation5 + $0x178] sm:$0xf]
    %v162 = vld [vmem:[#allocation5 + $0x17c] sm:$0xf]
    %v163 = vld [vmem:[#allocation5 + $0x180] sm:$0xf]
    %v164 = vld [vmem:[#allocation5 + $0x184] sm:$0xf]
    %v165 = vld [vmem:[#allocation5 + $0x188] sm:$0xf]
    %v166 = vld [vmem:[#allocation5 + $0x18c] sm:$0xf]
    %v167 = vld [vmem:[#allocation5 + $0x190] sm:$0xf]
    %v168 = vld [vmem:[#allocation5 + $0x194] sm:$0xf]
    %v169 = vld [vmem:[#allocation5 + $0x198] sm:$0xf]
    %v170 = vld [vmem:[#allocation5 + $0x19c] sm:$0xf]
    %v171 = vld [vmem:[#allocation5 + $0x1a0] sm:$0xf]
    %v172 = vld [vmem:[#allocation5 + $0x1a4] sm:$0xf]
    %v173 = vld [vmem:[#allocation5 + $0x1a8] sm:$0xf]
    %v174 = vld [vmem:[#allocation5 + $0x1ac] sm:$0xf]
    %v175 = vld [vmem:[#allocation5 + $0x1b0] sm:$0xf]
    %v176 = vld [vmem:[#allocation5 + $0x1b4] sm:$0xf]
    %v177 = vld [vmem:[#allocation5 + $0x1b8] sm:$0xf]
    %v178 = vld [vmem:[#allocation5 + $0x1bc] sm:$0xf]
    %v179 = vld [vmem:[#allocation5 + $0x1c0] sm:$0xf]
    %v180 = vld [vmem:[#allocation5 + $0x1c4] sm:$0xf]
    %v181 = vld [vmem:[#allocation5 + $0x1c8] sm:$0xf]
    %v182 = vld [vmem:[#allocation5 + $0x1cc] sm:$0xf]
    %v183 = vld [vmem:[#allocation5 + $0x1d0] sm:$0xf]
    %v184 = vld [vmem:[#allocation5 + $0x1d4] sm:$0xf]
    %v185 = vld [vmem:[#allocation5 + $0x1d8] sm:$0xf]
    %v186 = vld [vmem:[#allocation5 + $0x1dc] sm:$0xf]
    %v187 = vld [vmem:[#allocation5 + $0x1e0] sm:$0xf]
    %v188 = vld [vmem:[#allocation5 + $0x1e4] sm:$0xf]
    %v189 = vld [vmem:[#allocation5 + $0x1e8] sm:$0xf]
    %v190 = vld [vmem:[#allocation5 + $0x1ec] sm:$0xf]
    %v191 = vld [vmem:[#allocation5 + $0x1f0] sm:$0xf]
    %v192 = vld [vmem:[#allocation5 + $0x1f4] sm:$0xf]
    %v193 = vld [vmem:[#allocation5 + $0x1f8] sm:$0xf]
    %v194 = vld [vmem:[#allocation5 + $0x1fc] sm:$0xf]
    %v195 = vld [vmem:[#allocation5 + $0x200] sm:$0xf]
    %v196 = vld [vmem:[#allocation5 + $0x204] sm:$0xf]
    %v197 = vld [vmem:[#allocation5 + $0x208] sm:$0xf]
    %v198 = vld [vmem:[#allocation5 + $0x20c] sm:$0xf]
    %v199 = vld [vmem:[#allocation5 + $0x210] sm:$0xf]
    %v200 = vld [vmem:[#allocation5 + $0x214] sm:$0xf]
    %v201 = vld [vmem:[#allocation5 + $0x218] sm:$0xf]
    %v202 = vld [vmem:[#allocation5 + $0x21c] sm:$0xf]
    %v203 = vld [vmem:[#allocation5 + $0x220] sm:$0xf]
    %v204 = vld [vmem:[#allocation5 + $0x224] sm:$0xf]
    %v205 = vld [vmem:[#allocation5 + $0x228] sm:$0xf]
    %v206 = vld [vmem:[#allocation5 + $0x22c] sm:$0xf]
    %v207 = vld [vmem:[#allocation5 + $0x230] sm:$0xf]
    %v208 = vld [vmem:[#allocation5 + $0x234] sm:$0xf]
    %v209 = vld [vmem:[#allocation5 + $0x238] sm:$0xf]
    %v210 = vld [vmem:[#allocation5 + $0x23c] sm:$0xf]
    %v211 = vld [vmem:[#allocation5 + $0x240] sm:$0xf]
    %v212 = vld [vmem:[#allocation5 + $0x244] sm:$0xf]
    %v213 = vld [vmem:[#allocation5 + $0x248] sm:$0xf]
    %v214 = vld [vmem:[#allocation5 + $0x24c] sm:$0xf]
    %v215 = vld [vmem:[#allocation5 + $0x250] sm:$0xf]
    %v216 = vld [vmem:[#allocation5 + $0x254] sm:$0xf]
    %v217 = vld [vmem:[#allocation5 + $0x258] sm:$0xf]
    %v218 = vld [vmem:[#allocation5 + $0x25c] sm:$0xf]
    %v219 = vld [vmem:[#allocation5 + $0x260] sm:$0xf]
    %v220 = vld [vmem:[#allocation5 + $0x264] sm:$0xf]
    %v221 = vld [vmem:[#allocation5 + $0x268] sm:$0xf]
    %v222 = vld [vmem:[#allocation5 + $0x26c] sm:$0xf]
    %v223 = vld [vmem:[#allocation5 + $0x270] sm:$0xf]
    %v224 = vld [vmem:[#allocation5 + $0x274] sm:$0xf]
    %v225 = vld [vmem:[#allocation5 + $0x278] sm:$0xf]
    %v226 = vld [vmem:[#allocation5 + $0x27c] sm:$0xf]
    %v227 = vld [vmem:[#allocation5 + $0x280] sm:$0xf]
    %v228 = vld [vmem:[#allocation5 + $0x284] sm:$0xf]
    %v229 = vld [vmem:[#allocation5 + $0x288] sm:$0xf]
    %v230 = vld [vmem:[#allocation5 + $0x28c] sm:$0xf]
    %v231 = vld [vmem:[#allocation5 + $0x290] sm:$0xf]
    %v232 = vld [vmem:[#allocation5 + $0x294] sm:$0xf]
    %v233 = vld [vmem:[#allocation5 + $0x298] sm:$0xf]
    %v234 = vld [vmem:[#allocation5 + $0x29c] sm:$0xf]
    %v235 = vld [vmem:[#allocation5 + $0x2a0] sm:$0xf]
    %v236 = vld [vmem:[#allocation5 + $0x2a4] sm:$0xf]
    %v237 = vld [vmem:[#allocation5 + $0x2a8] sm:$0xf]
    %v238 = vld [vmem:[#allocation5 + $0x2ac] sm:$0xf]
    %v239 = vld [vmem:[#allocation5 + $0x2b0] sm:$0xf]
    %v240 = vld [vmem:[#allocation5 + $0x2b4] sm:$0xf]
    %v241 = vld [vmem:[#allocation5 + $0x2b8] sm:$0xf]
    %v242 = vld [vmem:[#allocation5 + $0x2bc] sm:$0xf]
    %v243 = vld [vmem:[#allocation5 + $0x2c0] sm:$0xf]
    %v244 = vld [vmem:[#allocation5 + $0x2c4] sm:$0xf]
    %v245 = vld [vmem:[#allocation5 + $0x2c8] sm:$0xf]
    %v246 = vld [vmem:[#allocation5 + $0x2cc] sm:$0xf]
    %v247 = vld [vmem:[#allocation5 + $0x2d0] sm:$0xf]
    %v248 = vld [vmem:[#allocation5 + $0x2d4] sm:$0xf]
    %v249 = vld [vmem:[#allocation5 + $0x2d8] sm:$0xf]
    %v250 = vld [vmem:[#allocation5 + $0x2dc] sm:$0xf]
    %v251 = vld [vmem:[#allocation5 + $0x2e0] sm:$0xf]
    %v252 = vld [vmem:[#allocation5 + $0x2e4] sm:$0xf]
    %v253 = vld [vmem:[#allocation5 + $0x2e8] sm:$0xf]
    %v254 = vld [vmem:[#allocation5 + $0x2ec] sm:$0xf]
    %v255 = vld [vmem:[#allocation5 + $0x2f0] sm:$0xf]
    %v256 = vld [vmem:[#allocation5 + $0x2f4] sm:$0xf]
    %v257 = vld [vmem:[#allocation5 + $0x2f8] sm:$0xf]
    %v258 = vld [vmem:[#allocation5 + $0x2fc] sm:$0xf]
    %v259 = vld [vmem:[#allocation5 + $0x300] sm:$0xf]
    %v260 = vld [vmem:[#allocation5 + $0x304] sm:$0xf]
    %v261 = vld [vmem:[#allocation5 + $0x308] sm:$0xf]
    %v262 = vld [vmem:[#allocation5 + $0x30c] sm:$0xf]
    %v263 = vld [vmem:[#allocation5 + $0x310] sm:$0xf]
    %v264 = vld [vmem:[#allocation5 + $0x314] sm:$0xf]
    %v265 = vld [vmem:[#allocation5 + $0x318] sm:$0xf]
    %v266 = vld [vmem:[#allocation5 + $0x31c] sm:$0xf]
    %v267 = vld [vmem:[#allocation5 + $0x320] sm:$0xf]
    %v268 = vld [vmem:[#allocation5 + $0x324] sm:$0xf]
    %v269 = vld [vmem:[#allocation5 + $0x328] sm:$0xf]
    %v270 = vld [vmem:[#allocation5 + $0x32c] sm:$0xf]
    %v271 = vld [vmem:[#allocation5 + $0x330] sm:$0xf]
    %v272 = vld [vmem:[#allocation5 + $0x334] sm:$0xf]
    %v273 = vld [vmem:[#allocation5 + $0x338] sm:$0xf]
    %v274 = vld [vmem:[#allocation5 + $0x33c] sm:$0xf]
    %v275 = vld [vmem:[#allocation5 + $0x340] sm:$0xf]
    %v276 = vld [vmem:[#allocation5 + $0x344] sm:$0xf]
    %v277 = vld [vmem:[#allocation5 + $0x348] sm:$0xf]
    %v278 = vld [vmem:[#allocation5 + $0x34c] sm:$0xf]
    %v279 = vld [vmem:[#allocation5 + $0x350] sm:$0xf]
    %v280 = vld [vmem:[#allocation5 + $0x354] sm:$0xf]
    %v281 = vld [vmem:[#allocation5 + $0x358] sm:$0xf]
    %v282 = vld [vmem:[#allocation5 + $0x35c] sm:$0xf]
    %v283 = vld [vmem:[#allocation5 + $0x360] sm:$0xf]
    %v284 = vld [vmem:[#allocation5 + $0x364] sm:$0xf]
    %v285 = vld [vmem:[#allocation5 + $0x368] sm:$0xf]
    %v286 = vld [vmem:[#allocation5 + $0x36c] sm:$0xf]
    %v287 = vld [vmem:[#allocation5 + $0x370] sm:$0xf]
    %v288 = vld [vmem:[#allocation5 + $0x374] sm:$0xf]
    %v289 = vld [vmem:[#allocation5 + $0x378] sm:$0xf]
    %v290 = vld [vmem:[#allocation5 + $0x37c] sm:$0xf]
    %v291 = vld [vmem:[#allocation5 + $0x380] sm:$0xf]
    %v292 = vld [vmem:[#allocation5 + $0x384] sm:$0xf]
    %v293 = vld [vmem:[#allocation5 + $0x388] sm:$0xf]
    %v294 = vld [vmem:[#allocation5 + $0x38c] sm:$0xf]
    %v295 = vld [vmem:[#allocation5 + $0x390] sm:$0xf]
    %v296 = vld [vmem:[#allocation5 + $0x394] sm:$0xf]
    %v297 = vld [vmem:[#allocation5 + $0x398] sm:$0xf]
    %v298 = vld [vmem:[#allocation5 + $0x39c] sm:$0xf]
    %v299 = vld [vmem:[#allocation5 + $0x3a0] sm:$0xf]
    %v300 = vld [vmem:[#allocation5 + $0x3a4] sm:$0xf]
    %v301 = vld [vmem:[#allocation5 + $0x3a8] sm:$0xf]
    %v302 = vld [vmem:[#allocation5 + $0x3ac] sm:$0xf]
    %v303 = vld [vmem:[#allocation5 + $0x3b0] sm:$0xf]
    %v304 = vld [vmem:[#allocation5 + $0x3b4] sm:$0xf]
    %v305 = vld [vmem:[#allocation5 + $0x3b8] sm:$0xf]
    %v306 = vld [vmem:[#allocation5 + $0x3bc] sm:$0xf]
    %v307 = vld [vmem:[#allocation5 + $0x3c0] sm:$0xf]
    %v308 = vld [vmem:[#allocation5 + $0x3c4] sm:$0xf]
    %v309 = vld [vmem:[#allocation5 + $0x3c8] sm:$0xf]
    %v310 = vld [vmem:[#allocation5 + $0x3cc] sm:$0xf]
    %v311 = vld [vmem:[#allocation5 + $0x3d0] sm:$0xf]
    %v312 = vld [vmem:[#allocation5 + $0x3d4] sm:$0xf]
    %v313 = vld [vmem:[#allocation5 + $0x3d8] sm:$0xf]
    %v314 = vld [vmem:[#allocation5 + $0x3dc] sm:$0xf]
    %v315 = vld [vmem:[#allocation5 + $0x3e0] sm:$0xf]
    %v316 = vld [vmem:[#allocation5 + $0x3e4] sm:$0xf]
    %v317 = vld [vmem:[#allocation5 + $0x3e8] sm:$0xf]
    %v318 = vld [vmem:[#allocation5 + $0x3ec] sm:$0xf]
    %v319 = vld [vmem:[#allocation5 + $0x3f0] sm:$0xf]
    %v320 = vld [vmem:[#allocation5 + $0x3f4] sm:$0xf]
    %v321 = vld [vmem:[#allocation5 + $0x3f8] sm:$0xf]
    %v322 = vld [vmem:[#allocation5 + $0x3fc] sm:$0xf]
    %v323 = vlaneseq
    %v324 = vshrl.u32 %v323, 7
    %v325 = vsub.s32 0, %v324
    %v326 = vrot.slane %v50, %v325
    %v343 = vunpack.c.l.b16 %v51
    %v344 = vunpack.c.h.b16 %v51
    %v345 = vunpack.c.l.b16 %v52
    %v346 = vunpack.c.h.b16 %v52
    %v347 = vunpack.c.l.b16 %v53
    %v348 = vunpack.c.h.b16 %v53
    %v349 = vunpack.c.l.b16 %v54
    %v350 = vunpack.c.h.b16 %v54
    %v351 = vunpack.c.l.b16 %v55
    %v352 = vunpack.c.h.b16 %v55
    %v353 = vunpack.c.l.b16 %v56
    %v354 = vunpack.c.h.b16 %v56
    %v355 = vunpack.c.l.b16 %v57
    %v356 = vunpack.c.h.b16 %v57
    %v357 = vunpack.c.l.b16 %v58
    %v358 = vunpack.c.h.b16 %v58
    %v359 = vunpack.c.l.b16 %v59
    %v360 = vunpack.c.h.b16 %v59
    %v361 = vunpack.c.l.b16 %v60
    %v362 = vunpack.c.h.b16 %v60
    %v363 = vunpack.c.l.b16 %v61
    %v364 = vunpack.c.h.b16 %v61
    %v365 = vunpack.c.l.b16 %v62
    %v366 = vunpack.c.h.b16 %v62
    %v367 = vunpack.c.l.b16 %v63
    %v368 = vunpack.c.h.b16 %v63
    %v369 = vunpack.c.l.b16 %v64
    %v370 = vunpack.c.h.b16 %v64
    %v371 = vunpack.c.l.b16 %v65
    %v372 = vunpack.c.h.b16 %v65
    %v373 = vunpack.c.l.b16 %v66
    %v374 = vunpack.c.h.b16 %v66
    %v375 = vpack.c.b16 %v359, %v343
    %v376 = vpack.c.b16 %v360, %v344
    %v377 = vpack.c.b16 %v361, %v345
    %v378 = vpack.c.b16 %v362, %v346
    %v379 = vpack.c.b16 %v363, %v347
    %v380 = vpack.c.b16 %v364, %v348
    %v381 = vpack.c.b16 %v365, %v349
    %v382 = vpack.c.b16 %v366, %v350
    %v383 = vpack.c.b16 %v367, %v351
    %v384 = vpack.c.b16 %v368, %v352
    %v385 = vpack.c.b16 %v369, %v353
    %v386 = vpack.c.b16 %v370, %v354
    %v387 = vpack.c.b16 %v371, %v355
    %v388 = vpack.c.b16 %v372, %v356
    %v389 = vpack.c.b16 %v373, %v357
    %v390 = vpack.c.b16 %v374, %v358
    %v663 = vunpack.c.l.b16 %v67
    %v664 = vunpack.c.l.b16 %v68
    %v665 = vunpack.c.l.b16 %v69
    %v666 = vunpack.c.l.b16 %v70
    %v667 = vunpack.c.l.b16 %v71
    %v668 = vunpack.c.l.b16 %v72
    %v669 = vunpack.c.l.b16 %v73
    %v670 = vunpack.c.l.b16 %v74
    %v671 = vunpack.c.l.b16 %v75
    %v672 = vunpack.c.l.b16 %v76
    %v673 = vunpack.c.l.b16 %v77
    %v674 = vunpack.c.l.b16 %v78
    %v675 = vunpack.c.l.b16 %v79
    %v676 = vunpack.c.l.b16 %v80
    %v677 = vunpack.c.l.b16 %v81
    %v678 = vunpack.c.l.b16 %v82
    %v679 = vunpack.c.l.b16 %v83
    %v680 = vunpack.c.l.b16 %v84
    %v681 = vunpack.c.l.b16 %v85
    %v682 = vunpack.c.l.b16 %v86
    %v683 = vunpack.c.l.b16 %v87
    %v684 = vunpack.c.l.b16 %v88
    %v685 = vunpack.c.l.b16 %v89
    %v686 = vunpack.c.l.b16 %v90
    %v687 = vunpack.c.l.b16 %v91
    %v688 = vunpack.c.l.b16 %v92
    %v689 = vunpack.c.l.b16 %v93
    %v690 = vunpack.c.l.b16 %v94
    %v691 = vunpack.c.l.b16 %v95
    %v692 = vunpack.c.l.b16 %v96
    %v693 = vunpack.c.l.b16 %v97
    %v694 = vunpack.c.l.b16 %v98
    %v695 = vunpack.c.l.b16 %v99
    %v696 = vunpack.c.l.b16 %v100
    %v697 = vunpack.c.l.b16 %v101
    %v698 = vunpack.c.l.b16 %v102
    %v699 = vunpack.c.l.b16 %v103
    %v700 = vunpack.c.l.b16 %v104
    %v701 = vunpack.c.l.b16 %v105
    %v702 = vunpack.c.l.b16 %v106
    %v703 = vunpack.c.l.b16 %v107
    %v704 = vunpack.c.l.b16 %v108
    %v705 = vunpack.c.l.b16 %v109
    %v706 = vunpack.c.l.b16 %v110
    %v707 = vunpack.c.l.b16 %v111
    %v708 = vunpack.c.l.b16 %v112
    %v709 = vunpack.c.l.b16 %v113
    %v710 = vunpack.c.l.b16 %v114
    %v711 = vunpack.c.l.b16 %v115
    %v712 = vunpack.c.l.b16 %v116
    %v713 = vunpack.c.l.b16 %v117
    %v714 = vunpack.c.l.b16 %v118
    %v715 = vunpack.c.l.b16 %v119
    %v716 = vunpack.c.l.b16 %v120
    %v717 = vunpack.c.l.b16 %v121
    %v718 = vunpack.c.l.b16 %v122
    %v719 = vunpack.c.l.b16 %v123
    %v720 = vunpack.c.l.b16 %v124
    %v721 = vunpack.c.l.b16 %v125
    %v722 = vunpack.c.l.b16 %v126
    %v723 = vunpack.c.l.b16 %v127
    %v724 = vunpack.c.l.b16 %v128
    %v725 = vunpack.c.l.b16 %v129
    %v726 = vunpack.c.l.b16 %v130
    %v727 = vunpack.c.l.b16 %v131
    %v728 = vunpack.c.l.b16 %v132
    %v729 = vunpack.c.l.b16 %v133
    %v730 = vunpack.c.l.b16 %v134
    %v731 = vunpack.c.l.b16 %v135
    %v732 = vunpack.c.l.b16 %v136
    %v733 = vunpack.c.l.b16 %v137
    %v734 = vunpack.c.l.b16 %v138
    %v735 = vunpack.c.l.b16 %v139
    %v736 = vunpack.c.l.b16 %v140
    %v737 = vunpack.c.l.b16 %v141
    %v738 = vunpack.c.l.b16 %v142
    %v739 = vunpack.c.l.b16 %v143
    %v740 = vunpack.c.l.b16 %v144
    %v741 = vunpack.c.l.b16 %v145
    %v742 = vunpack.c.l.b16 %v146
    %v743 = vunpack.c.l.b16 %v147
    %v744 = vunpack.c.l.b16 %v148
    %v745 = vunpack.c.l.b16 %v149
    %v746 = vunpack.c.l.b16 %v150
    %v747 = vunpack.c.l.b16 %v151
    %v748 = vunpack.c.l.b16 %v152
    %v749 = vunpack.c.l.b16 %v153
    %v750 = vunpack.c.l.b16 %v154
    %v751 = vunpack.c.l.b16 %v155
    %v752 = vunpack.c.l.b16 %v156
    %v753 = vunpack.c.l.b16 %v157
    %v754 = vunpack.c.l.b16 %v158
    %v755 = vunpack.c.l.b16 %v159
    %v756 = vunpack.c.l.b16 %v160
    %v757 = vunpack.c.l.b16 %v161
    %v758 = vunpack.c.l.b16 %v162
    %v759 = vunpack.c.l.b16 %v163
    %v760 = vunpack.c.l.b16 %v164
    %v761 = vunpack.c.l.b16 %v165
    %v762 = vunpack.c.l.b16 %v166
    %v763 = vunpack.c.l.b16 %v167
    %v764 = vunpack.c.l.b16 %v168
    %v765 = vunpack.c.l.b16 %v169
    %v766 = vunpack.c.l.b16 %v170
    %v767 = vunpack.c.l.b16 %v171
    %v768 = vunpack.c.l.b16 %v172
    %v769 = vunpack.c.l.b16 %v173
    %v770 = vunpack.c.l.b16 %v174
    %v771 = vunpack.c.l.b16 %v175
    %v772 = vunpack.c.l.b16 %v176
    %v773 = vunpack.c.l.b16 %v177
    %v774 = vunpack.c.l.b16 %v178
    %v775 = vunpack.c.l.b16 %v179
    %v776 = vunpack.c.l.b16 %v180
    %v777 = vunpack.c.l.b16 %v181
    %v778 = vunpack.c.l.b16 %v182
    %v779 = vunpack.c.l.b16 %v183
    %v780 = vunpack.c.l.b16 %v184
    %v781 = vunpack.c.l.b16 %v185
    %v782 = vunpack.c.l.b16 %v186
    %v783 = vunpack.c.l.b16 %v187
    %v784 = vunpack.c.l.b16 %v188
    %v785 = vunpack.c.l.b16 %v189
    %v786 = vunpack.c.l.b16 %v190
    %v787 = vunpack.c.l.b16 %v191
    %v788 = vunpack.c.l.b16 %v192
    %v789 = vunpack.c.l.b16 %v193
    %v790 = vunpack.c.l.b16 %v194
    %v791 = vunpack.c.l.b16 %v195
    %v792 = vunpack.c.l.b16 %v196
    %v793 = vunpack.c.l.b16 %v197
    %v794 = vunpack.c.l.b16 %v198
    %v795 = vunpack.c.l.b16 %v199
    %v796 = vunpack.c.l.b16 %v200
    %v797 = vunpack.c.l.b16 %v201
    %v798 = vunpack.c.l.b16 %v202
    %v799 = vunpack.c.l.b16 %v203
    %v800 = vunpack.c.l.b16 %v204
    %v801 = vunpack.c.l.b16 %v205
    %v802 = vunpack.c.l.b16 %v206
    %v803 = vunpack.c.l.b16 %v207
    %v804 = vunpack.c.l.b16 %v208
    %v805 = vunpack.c.l.b16 %v209
    %v806 = vunpack.c.l.b16 %v210
    %v807 = vunpack.c.l.b16 %v211
    %v808 = vunpack.c.l.b16 %v212
    %v809 = vunpack.c.l.b16 %v213
    %v810 = vunpack.c.l.b16 %v214
    %v811 = vunpack.c.l.b16 %v215
    %v812 = vunpack.c.l.b16 %v216
    %v813 = vunpack.c.l.b16 %v217
    %v814 = vunpack.c.l.b16 %v218
    %v815 = vunpack.c.l.b16 %v219
    %v816 = vunpack.c.l.b16 %v220
    %v817 = vunpack.c.l.b16 %v221
    %v818 = vunpack.c.l.b16 %v222
    %v819 = vunpack.c.l.b16 %v223
    %v820 = vunpack.c.l.b16 %v224
    %v821 = vunpack.c.l.b16 %v225
    %v822 = vunpack.c.l.b16 %v226
    %v823 = vunpack.c.l.b16 %v227
    %v824 = vunpack.c.l.b16 %v228
    %v825 = vunpack.c.l.b16 %v229
    %v826 = vunpack.c.l.b16 %v230
    %v827 = vunpack.c.l.b16 %v231
    %v828 = vunpack.c.l.b16 %v232
    %v829 = vunpack.c.l.b16 %v233
    %v830 = vunpack.c.l.b16 %v234
    %v831 = vunpack.c.l.b16 %v235
    %v832 = vunpack.c.l.b16 %v236
    %v833 = vunpack.c.l.b16 %v237
    %v834 = vunpack.c.l.b16 %v238
    %v835 = vunpack.c.l.b16 %v239
    %v836 = vunpack.c.l.b16 %v240
    %v837 = vunpack.c.l.b16 %v241
    %v838 = vunpack.c.l.b16 %v242
    %v839 = vunpack.c.l.b16 %v243
    %v840 = vunpack.c.l.b16 %v244
    %v841 = vunpack.c.l.b16 %v245
    %v842 = vunpack.c.l.b16 %v246
    %v843 = vunpack.c.l.b16 %v247
    %v844 = vunpack.c.l.b16 %v248
    %v845 = vunpack.c.l.b16 %v249
    %v846 = vunpack.c.l.b16 %v250
    %v847 = vunpack.c.l.b16 %v251
    %v848 = vunpack.c.l.b16 %v252
    %v849 = vunpack.c.l.b16 %v253
    %v850 = vunpack.c.l.b16 %v254
    %v851 = vunpack.c.l.b16 %v255
    %v852 = vunpack.c.l.b16 %v256
    %v853 = vunpack.c.l.b16 %v257
    %v854 = vunpack.c.l.b16 %v258
    %v855 = vunpack.c.l.b16 %v259
    %v856 = vunpack.c.l.b16 %v260
    %v857 = vunpack.c.l.b16 %v261
    %v858 = vunpack.c.l.b16 %v262
    %v859 = vunpack.c.l.b16 %v263
    %v860 = vunpack.c.l.b16 %v264
    %v861 = vunpack.c.l.b16 %v265
    %v862 = vunpack.c.l.b16 %v266
    %v863 = vunpack.c.l.b16 %v267
    %v864 = vunpack.c.l.b16 %v268
    %v865 = vunpack.c.l.b16 %v269
    %v866 = vunpack.c.l.b16 %v270
    %v867 = vunpack.c.l.b16 %v271
    %v868 = vunpack.c.l.b16 %v272
    %v869 = vunpack.c.l.b16 %v273
    %v870 = vunpack.c.l.b16 %v274
    %v871 = vunpack.c.l.b16 %v275
    %v872 = vunpack.c.l.b16 %v276
    %v873 = vunpack.c.l.b16 %v277
    %v874 = vunpack.c.l.b16 %v278
    %v875 = vunpack.c.l.b16 %v279
    %v876 = vunpack.c.l.b16 %v280
    %v877 = vunpack.c.l.b16 %v281
    %v878 = vunpack.c.l.b16 %v282
    %v879 = vunpack.c.l.b16 %v283
    %v880 = vunpack.c.l.b16 %v284
    %v881 = vunpack.c.l.b16 %v285
    %v882 = vunpack.c.l.b16 %v286
    %v883 = vunpack.c.l.b16 %v287
    %v884 = vunpack.c.l.b16 %v288
    %v885 = vunpack.c.l.b16 %v289
    %v886 = vunpack.c.l.b16 %v290
    %v887 = vunpack.c.l.b16 %v291
    %v888 = vunpack.c.l.b16 %v292
    %v889 = vunpack.c.l.b16 %v293
    %v890 = vunpack.c.l.b16 %v294
    %v891 = vunpack.c.l.b16 %v295
    %v892 = vunpack.c.l.b16 %v296
    %v893 = vunpack.c.l.b16 %v297
    %v894 = vunpack.c.l.b16 %v298
    %v895 = vunpack.c.l.b16 %v299
    %v896 = vunpack.c.l.b16 %v300
    %v897 = vunpack.c.l.b16 %v301
    %v898 = vunpack.c.l.b16 %v302
    %v899 = vunpack.c.l.b16 %v303
    %v900 = vunpack.c.l.b16 %v304
    %v901 = vunpack.c.l.b16 %v305
    %v902 = vunpack.c.l.b16 %v306
    %v903 = vunpack.c.l.b16 %v307
    %v904 = vunpack.c.l.b16 %v308
    %v905 = vunpack.c.l.b16 %v309
    %v906 = vunpack.c.l.b16 %v310
    %v907 = vunpack.c.l.b16 %v311
    %v908 = vunpack.c.l.b16 %v312
    %v909 = vunpack.c.l.b16 %v313
    %v910 = vunpack.c.l.b16 %v314
    %v911 = vunpack.c.l.b16 %v315
    %v912 = vunpack.c.l.b16 %v316
    %v913 = vunpack.c.l.b16 %v317
    %v914 = vunpack.c.l.b16 %v318
    %v915 = vunpack.c.l.b16 %v319
    %v916 = vunpack.c.l.b16 %v320
    %v917 = vunpack.c.l.b16 %v321
    %v918 = vunpack.c.l.b16 %v322
    %v919 = vpack.c.b16 %v664, %v663
    %v920 = vpack.c.b16 %v666, %v665
    %v921 = vpack.c.b16 %v668, %v667
    %v922 = vpack.c.b16 %v670, %v669
    %v923 = vpack.c.b16 %v672, %v671
    %v924 = vpack.c.b16 %v674, %v673
    %v925 = vpack.c.b16 %v676, %v675
    %v926 = vpack.c.b16 %v678, %v677
    %v927 = vpack.c.b16 %v680, %v679
    %v928 = vpack.c.b16 %v682, %v681
    %v929 = vpack.c.b16 %v684, %v683
    %v930 = vpack.c.b16 %v686, %v685
    %v931 = vpack.c.b16 %v688, %v687
    %v932 = vpack.c.b16 %v690, %v689
    %v933 = vpack.c.b16 %v692, %v691
    %v934 = vpack.c.b16 %v694, %v693
    %v935 = vpack.c.b16 %v696, %v695
    %v936 = vpack.c.b16 %v698, %v697
    %v937 = vpack.c.b16 %v700, %v699
    %v938 = vpack.c.b16 %v702, %v701
    %v939 = vpack.c.b16 %v704, %v703
    %v940 = vpack.c.b16 %v706, %v705
    %v941 = vpack.c.b16 %v708, %v707
    %v942 = vpack.c.b16 %v710, %v709
    %v943 = vpack.c.b16 %v712, %v711
    %v944 = vpack.c.b16 %v714, %v713
    %v945 = vpack.c.b16 %v716, %v715
    %v946 = vpack.c.b16 %v718, %v717
    %v947 = vpack.c.b16 %v720, %v719
    %v948 = vpack.c.b16 %v722, %v721
    %v949 = vpack.c.b16 %v724, %v723
    %v950 = vpack.c.b16 %v726, %v725
    %v951 = vpack.c.b16 %v728, %v727
    %v952 = vpack.c.b16 %v730, %v729
    %v953 = vpack.c.b16 %v732, %v731
    %v954 = vpack.c.b16 %v734, %v733
    %v955 = vpack.c.b16 %v736, %v735
    %v956 = vpack.c.b16 %v738, %v737
    %v957 = vpack.c.b16 %v740, %v739
    %v958 = vpack.c.b16 %v742, %v741
    %v959 = vpack.c.b16 %v744, %v743
    %v960 = vpack.c.b16 %v746, %v745
    %v961 = vpack.c.b16 %v748, %v747
    %v962 = vpack.c.b16 %v750, %v749
    %v963 = vpack.c.b16 %v752, %v751
    %v964 = vpack.c.b16 %v754, %v753
    %v965 = vpack.c.b16 %v756, %v755
    %v966 = vpack.c.b16 %v758, %v757
    %v967 = vpack.c.b16 %v760, %v759
    %v968 = vpack.c.b16 %v762, %v761
    %v969 = vpack.c.b16 %v764, %v763
    %v970 = vpack.c.b16 %v766, %v765
    %v971 = vpack.c.b16 %v768, %v767
    %v972 = vpack.c.b16 %v770, %v769
    %v973 = vpack.c.b16 %v772, %v771
    %v974 = vpack.c.b16 %v774, %v773
    %v975 = vpack.c.b16 %v776, %v775
    %v976 = vpack.c.b16 %v778, %v777
    %v977 = vpack.c.b16 %v780, %v779
    %v978 = vpack.c.b16 %v782, %v781
    %v979 = vpack.c.b16 %v784, %v783
    %v980 = vpack.c.b16 %v786, %v785
    %v981 = vpack.c.b16 %v788, %v787
    %v982 = vpack.c.b16 %v790, %v789
    %v983 = vpack.c.b16 %v792, %v791
    %v984 = vpack.c.b16 %v794, %v793
    %v985 = vpack.c.b16 %v796, %v795
    %v986 = vpack.c.b16 %v798, %v797
    %v987 = vpack.c.b16 %v800, %v799
    %v988 = vpack.c.b16 %v802, %v801
    %v989 = vpack.c.b16 %v804, %v803
    %v990 = vpack.c.b16 %v806, %v805
    %v991 = vpack.c.b16 %v808, %v807
    %v992 = vpack.c.b16 %v810, %v809
    %v993 = vpack.c.b16 %v812, %v811
    %v994 = vpack.c.b16 %v814, %v813
    %v995 = vpack.c.b16 %v816, %v815
    %v996 = vpack.c.b16 %v818, %v817
    %v997 = vpack.c.b16 %v820, %v819
    %v998 = vpack.c.b16 %v822, %v821
    %v999 = vpack.c.b16 %v824, %v823
    %v1000 = vpack.c.b16 %v826, %v825
    %v1001 = vpack.c.b16 %v828, %v827
    %v1002 = vpack.c.b16 %v830, %v829
    %v1003 = vpack.c.b16 %v832, %v831
    %v1004 = vpack.c.b16 %v834, %v833
    %v1005 = vpack.c.b16 %v836, %v835
    %v1006 = vpack.c.b16 %v838, %v837
    %v1007 = vpack.c.b16 %v840, %v839
    %v1008 = vpack.c.b16 %v842, %v841
    %v1009 = vpack.c.b16 %v844, %v843
    %v1010 = vpack.c.b16 %v846, %v845
    %v1011 = vpack.c.b16 %v848, %v847
    %v1012 = vpack.c.b16 %v850, %v849
    %v1013 = vpack.c.b16 %v852, %v851
    %v1014 = vpack.c.b16 %v854, %v853
    %v1015 = vpack.c.b16 %v856, %v855
    %v1016 = vpack.c.b16 %v858, %v857
    %v1017 = vpack.c.b16 %v860, %v859
    %v1018 = vpack.c.b16 %v862, %v861
    %v1019 = vpack.c.b16 %v864, %v863
    %v1020 = vpack.c.b16 %v866, %v865
    %v1021 = vpack.c.b16 %v868, %v867
    %v1022 = vpack.c.b16 %v870, %v869
    %v1023 = vpack.c.b16 %v872, %v871
    %v1024 = vpack.c.b16 %v874, %v873
    %v1025 = vpack.c.b16 %v876, %v875
    %v1026 = vpack.c.b16 %v878, %v877
    %v1027 = vpack.c.b16 %v880, %v879
    %v1028 = vpack.c.b16 %v882, %v881
    %v1029 = vpack.c.b16 %v884, %v883
    %v1030 = vpack.c.b16 %v886, %v885
    %v1031 = vpack.c.b16 %v888, %v887
    %v1032 = vpack.c.b16 %v890, %v889
    %v1033 = vpack.c.b16 %v892, %v891
    %v1034 = vpack.c.b16 %v894, %v893
    %v1035 = vpack.c.b16 %v896, %v895
    %v1036 = vpack.c.b16 %v898, %v897
    %v1037 = vpack.c.b16 %v900, %v899
    %v1038 = vpack.c.b16 %v902, %v901
    %v1039 = vpack.c.b16 %v904, %v903
    %v1040 = vpack.c.b16 %v906, %v905
    %v1041 = vpack.c.b16 %v908, %v907
    %v1042 = vpack.c.b16 %v910, %v909
    %v1043 = vpack.c.b16 %v912, %v911
    %v1044 = vpack.c.b16 %v914, %v913
    %v1045 = vpack.c.b16 %v916, %v915
    %v1046 = vpack.c.b16 %v918, %v917
    %1175 = vmatprep.subr.bf16.mxu0 0
    %1176 = vmatpush1.bf16.msra.mxu0 %v926
    %1177 = vmatprep.subr.bf16.mxu0 0
    %1178 = vmatpush1.bf16.msra.mxu0 %v925
    %1179 = vmatprep.subr.bf16.mxu0 0
    %1180 = vmatpush1.bf16.msra.mxu0 %v924
    %1181 = vmatprep.subr.bf16.mxu0 0
    %1182 = vmatpush1.bf16.msra.mxu0 %v923
    %1183 = vmatprep.subr.bf16.mxu0 0
    %1184 = vmatpush1.bf16.msra.mxu0 %v922
    %1185 = vmatprep.subr.bf16.mxu0 0
    %1186 = vmatpush1.bf16.msra.mxu0 %v921
    %1187 = vmatprep.subr.bf16.mxu0 0
    %1188 = vmatpush1.bf16.msra.mxu0 %v920
    %1189 = vmatprep.subr.bf16.mxu0 0
    %1190 = vmatpush1.bf16.msra.mxu0 %v919
    %1191 = vmatprep.subr.bf16.mxu0 0
    %1192 = vmatpush2.bf16.msra.mxu0 %v934
    %1193 = vmatprep.subr.bf16.mxu0 0
    %1194 = vmatpush2.bf16.msra.mxu0 %v933
    %1195 = vmatprep.subr.bf16.mxu0 0
    %1196 = vmatpush2.bf16.msra.mxu0 %v932
    %1197 = vmatprep.subr.bf16.mxu0 0
    %1198 = vmatpush2.bf16.msra.mxu0 %v931
    %1199 = vmatprep.subr.bf16.mxu0 0
    %1200 = vmatpush2.bf16.msra.mxu0 %v930
    %1201 = vmatprep.subr.bf16.mxu0 0
    %1202 = vmatpush2.bf16.msra.mxu0 %v929
    %1203 = vmatprep.subr.bf16.mxu0 0
    %1204 = vmatpush2.bf16.msra.mxu0 %v928
    %1205 = vmatprep.subr.bf16.mxu0 0
    %1206 = vmatpush2.bf16.msra.mxu0 %v927
    %1207 = vmatprep.mubr.bf16.mxu0 %v376
    %1208 = vmatmul.mubr.bf16.gmra.mxu0 %v375
    %v1209 = vpop.f32.mrf.mxu0
    %v1210 = vadd.f32 %v326, %v1209
    %v1211 = vpop.f32.mrf.mxu0
    %v1212 = vpop.f32.mrf.mxu0
    %v1213 = vadd.f32 %v326, %v1212
    %v1214 = vpop.f32.mrf.mxu0
    %1215 = vdwg.mxu0
    %1216 = vmatprep.subr.bf16.mxu0 0
    %1217 = vmatpush1.bf16.msra.mxu0 %v942
    %1218 = vmatprep.subr.bf16.mxu0 0
    %1219 = vmatpush1.bf16.msra.mxu0 %v941
    %1220 = vmatprep.subr.bf16.mxu0 0
    %1221 = vmatpush1.bf16.msra.mxu0 %v940
    %1222 = vmatprep.subr.bf16.mxu0 0
    %1223 = vmatpush1.bf16.msra.mxu0 %v939
    %1224 = vmatprep.subr.bf16.mxu0 0
    %1225 = vmatpush1.bf16.msra.mxu0 %v938
    %1226 = vmatprep.subr.bf16.mxu0 0
    %1227 = vmatpush1.bf16.msra.mxu0 %v937
    %1228 = vmatprep.subr.bf16.mxu0 0
    %1229 = vmatpush1.bf16.msra.mxu0 %v936
    %1230 = vmatprep.subr.bf16.mxu0 0
    %1231 = vmatpush1.bf16.msra.mxu0 %v935
    %1232 = vmatprep.subr.bf16.mxu0 0
    %1233 = vmatpush2.bf16.msra.mxu0 %v950
    %1234 = vmatprep.subr.bf16.mxu0 0
    %1235 = vmatpush2.bf16.msra.mxu0 %v949
    %1236 = vmatprep.subr.bf16.mxu0 0
    %1237 = vmatpush2.bf16.msra.mxu0 %v948
    %1238 = vmatprep.subr.bf16.mxu0 0
    %1239 = vmatpush2.bf16.msra.mxu0 %v947
    %1240 = vmatprep.subr.bf16.mxu0 0
    %1241 = vmatpush2.bf16.msra.mxu0 %v946
    %1242 = vmatprep.subr.bf16.mxu0 0
    %1243 = vmatpush2.bf16.msra.mxu0 %v945
    %1244 = vmatprep.subr.bf16.mxu0 0
    %1245 = vmatpush2.bf16.msra.mxu0 %v944
    %1246 = vmatprep.subr.bf16.mxu0 0
    %1247 = vmatpush2.bf16.msra.mxu0 %v943
    %1248 = vmatprep.mubr.bf16.mxu0 %v378
    %1249 = vmatmul.mubr.bf16.gmra.mxu0 %v377
    %v1250 = vpop.f32.mrf.mxu0
    %v1251 = vadd.f32 %v1210, %v1250
    %v1252 = vpop.f32.mrf.mxu0
    %v1253 = vpop.f32.mrf.mxu0
    %v1254 = vadd.f32 %v1213, %v1253
    %v1255 = vpop.f32.mrf.mxu0
    %1256 = vdwg.mxu0
    %1257 = vmatprep.subr.bf16.mxu0 0
    %1258 = vmatpush1.bf16.msra.mxu0 %v958
    %1259 = vmatprep.subr.bf16.mxu0 0
    %1260 = vmatpush1.bf16.msra.mxu0 %v957
    %1261 = vmatprep.subr.bf16.mxu0 0
    %1262 = vmatpush1.bf16.msra.mxu0 %v956
    %1263 = vmatprep.subr.bf16.mxu0 0
    %1264 = vmatpush1.bf16.msra.mxu0 %v955
    %1265 = vmatprep.subr.bf16.mxu0 0
    %1266 = vmatpush1.bf16.msra.mxu0 %v954
    %1267 = vmatprep.subr.bf16.mxu0 0
    %1268 = vmatpush1.bf16.msra.mxu0 %v953
    %1269 = vmatprep.subr.bf16.mxu0 0
    %1270 = vmatpush1.bf16.msra.mxu0 %v952
    %1271 = vmatprep.subr.bf16.mxu0 0
    %1272 = vmatpush1.bf16.msra.mxu0 %v951
    %1273 = vmatprep.subr.bf16.mxu0 0
    %1274 = vmatpush2.bf16.msra.mxu0 %v966
    %1275 = vmatprep.subr.bf16.mxu0 0
    %1276 = vmatpush2.bf16.msra.mxu0 %v965
    %1277 = vmatprep.subr.bf16.mxu0 0
    %1278 = vmatpush2.bf16.msra.mxu0 %v964
    %1279 = vmatprep.subr.bf16.mxu0 0
    %1280 = vmatpush2.bf16.msra.mxu0 %v963
    %1281 = vmatprep.subr.bf16.mxu0 0
    %1282 = vmatpush2.bf16.msra.mxu0 %v962
    %1283 = vmatprep.subr.bf16.mxu0 0
    %1284 = vmatpush2.bf16.msra.mxu0 %v961
    %1285 = vmatprep.subr.bf16.mxu0 0
    %1286 = vmatpush2.bf16.msra.mxu0 %v960
    %1287 = vmatprep.subr.bf16.mxu0 0
    %1288 = vmatpush2.bf16.msra.mxu0 %v959
    %1289 = vmatprep.mubr.bf16.mxu0 %v380
    %1290 = vmatmul.mubr.bf16.gmra.mxu0 %v379
    %v1291 = vpop.f32.mrf.mxu0
    %v1292 = vadd.f32 %v1251, %v1291
    %v1293 = vpop.f32.mrf.mxu0
    %v1294 = vpop.f32.mrf.mxu0
    %v1295 = vadd.f32 %v1254, %v1294
    %v1296 = vpop.f32.mrf.mxu0
    %1297 = vdwg.mxu0
    %1298 = vmatprep.subr.bf16.mxu0 0
    %1299 = vmatpush1.bf16.msra.mxu0 %v974
    %1300 = vmatprep.subr.bf16.mxu0 0
    %1301 = vmatpush1.bf16.msra.mxu0 %v973
    %1302 = vmatprep.subr.bf16.mxu0 0
    %1303 = vmatpush1.bf16.msra.mxu0 %v972
    %1304 = vmatprep.subr.bf16.mxu0 0
    %1305 = vmatpush1.bf16.msra.mxu0 %v971
    %1306 = vmatprep.subr.bf16.mxu0 0
    %1307 = vmatpush1.bf16.msra.mxu0 %v970
    %1308 = vmatprep.subr.bf16.mxu0 0
    %1309 = vmatpush1.bf16.msra.mxu0 %v969
    %1310 = vmatprep.subr.bf16.mxu0 0
    %1311 = vmatpush1.bf16.msra.mxu0 %v968
    %1312 = vmatprep.subr.bf16.mxu0 0
    %1313 = vmatpush1.bf16.msra.mxu0 %v967
    %1314 = vmatprep.subr.bf16.mxu0 0
    %1315 = vmatpush2.bf16.msra.mxu0 %v982
    %1316 = vmatprep.subr.bf16.mxu0 0
    %1317 = vmatpush2.bf16.msra.mxu0 %v981
    %1318 = vmatprep.subr.bf16.mxu0 0
    %1319 = vmatpush2.bf16.msra.mxu0 %v980
    %1320 = vmatprep.subr.bf16.mxu0 0
    %1321 = vmatpush2.bf16.msra.mxu0 %v979
    %1322 = vmatprep.subr.bf16.mxu0 0
    %1323 = vmatpush2.bf16.msra.mxu0 %v978
    %1324 = vmatprep.subr.bf16.mxu0 0
    %1325 = vmatpush2.bf16.msra.mxu0 %v977
    %1326 = vmatprep.subr.bf16.mxu0 0
    %1327 = vmatpush2.bf16.msra.mxu0 %v976
    %1328 = vmatprep.subr.bf16.mxu0 0
    %1329 = vmatpush2.bf16.msra.mxu0 %v975
    %1330 = vmatprep.mubr.bf16.mxu0 %v382
    %1331 = vmatmul.mubr.bf16.gmra.mxu0 %v381
    %v1332 = vpop.f32.mrf.mxu0
    %v1333 = vadd.f32 %v1292, %v1332
    %v1334 = vpop.f32.mrf.mxu0
    %v1335 = vpop.f32.mrf.mxu0
    %v1336 = vadd.f32 %v1295, %v1335
    %v1337 = vpop.f32.mrf.mxu0
    %1338 = vdwg.mxu0
    %1339 = vmatprep.subr.bf16.mxu0 0
    %1340 = vmatpush1.bf16.msra.mxu0 %v990
    %1341 = vmatprep.subr.bf16.mxu0 0
    %1342 = vmatpush1.bf16.msra.mxu0 %v989
    %1343 = vmatprep.subr.bf16.mxu0 0
    %1344 = vmatpush1.bf16.msra.mxu0 %v988
    %1345 = vmatprep.subr.bf16.mxu0 0
    %1346 = vmatpush1.bf16.msra.mxu0 %v987
    %1347 = vmatprep.subr.bf16.mxu0 0
    %1348 = vmatpush1.bf16.msra.mxu0 %v986
    %1349 = vmatprep.subr.bf16.mxu0 0
    %1350 = vmatpush1.bf16.msra.mxu0 %v985
    %1351 = vmatprep.subr.bf16.mxu0 0
    %1352 = vmatpush1.bf16.msra.mxu0 %v984
    %1353 = vmatprep.subr.bf16.mxu0 0
    %1354 = vmatpush1.bf16.msra.mxu0 %v983
    %1355 = vmatprep.subr.bf16.mxu0 0
    %1356 = vmatpush2.bf16.msra.mxu0 %v998
    %1357 = vmatprep.subr.bf16.mxu0 0
    %1358 = vmatpush2.bf16.msra.mxu0 %v997
    %1359 = vmatprep.subr.bf16.mxu0 0
    %1360 = vmatpush2.bf16.msra.mxu0 %v996
    %1361 = vmatprep.subr.bf16.mxu0 0
    %1362 = vmatpush2.bf16.msra.mxu0 %v995
    %1363 = vmatprep.subr.bf16.mxu0 0
    %1364 = vmatpush2.bf16.msra.mxu0 %v994
    %1365 = vmatprep.subr.bf16.mxu0 0
    %1366 = vmatpush2.bf16.msra.mxu0 %v993
    %1367 = vmatprep.subr.bf16.mxu0 0
    %1368 = vmatpush2.bf16.msra.mxu0 %v992
    %1369 = vmatprep.subr.bf16.mxu0 0
    %1370 = vmatpush2.bf16.msra.mxu0 %v991
    %1371 = vmatprep.mubr.bf16.mxu0 %v384
    %1372 = vmatmul.mubr.bf16.gmra.mxu0 %v383
    %v1373 = vpop.f32.mrf.mxu0
    %v1374 = vadd.f32 %v1333, %v1373
    %v1375 = vpop.f32.mrf.mxu0
    %v1376 = vpop.f32.mrf.mxu0
    %v1377 = vadd.f32 %v1336, %v1376
    %v1378 = vpop.f32.mrf.mxu0
    %1379 = vdwg.mxu0
    %1380 = vmatprep.subr.bf16.mxu0 0
    %1381 = vmatpush1.bf16.msra.mxu0 %v1006
    %1382 = vmatprep.subr.bf16.mxu0 0
    %1383 = vmatpush1.bf16.msra.mxu0 %v1005
    %1384 = vmatprep.subr.bf16.mxu0 0
    %1385 = vmatpush1.bf16.msra.mxu0 %v1004
    %1386 = vmatprep.subr.bf16.mxu0 0
    %1387 = vmatpush1.bf16.msra.mxu0 %v1003
    %1388 = vmatprep.subr.bf16.mxu0 0
    %1389 = vmatpush1.bf16.msra.mxu0 %v1002
    %1390 = vmatprep.subr.bf16.mxu0 0
    %1391 = vmatpush1.bf16.msra.mxu0 %v1001
    %1392 = vmatprep.subr.bf16.mxu0 0
    %1393 = vmatpush1.bf16.msra.mxu0 %v1000
    %1394 = vmatprep.subr.bf16.mxu0 0
    %1395 = vmatpush1.bf16.msra.mxu0 %v999
    %1396 = vmatprep.subr.bf16.mxu0 0
    %1397 = vmatpush2.bf16.msra.mxu0 %v1014
    %1398 = vmatprep.subr.bf16.mxu0 0
    %1399 = vmatpush2.bf16.msra.mxu0 %v1013
    %1400 = vmatprep.subr.bf16.mxu0 0
    %1401 = vmatpush2.bf16.msra.mxu0 %v1012
    %1402 = vmatprep.subr.bf16.mxu0 0
    %1403 = vmatpush2.bf16.msra.mxu0 %v1011
    %1404 = vmatprep.subr.bf16.mxu0 0
    %1405 = vmatpush2.bf16.msra.mxu0 %v1010
    %1406 = vmatprep.subr.bf16.mxu0 0
    %1407 = vmatpush2.bf16.msra.mxu0 %v1009
    %1408 = vmatprep.subr.bf16.mxu0 0
    %1409 = vmatpush2.bf16.msra.mxu0 %v1008
    %1410 = vmatprep.subr.bf16.mxu0 0
    %1411 = vmatpush2.bf16.msra.mxu0 %v1007
    %1412 = vmatprep.mubr.bf16.mxu0 %v386
    %1413 = vmatmul.mubr.bf16.gmra.mxu0 %v385
    %v1414 = vpop.f32.mrf.mxu0
    %v1415 = vadd.f32 %v1374, %v1414
    %v1416 = vpop.f32.mrf.mxu0
    %v1417 = vpop.f32.mrf.mxu0
    %v1418 = vadd.f32 %v1377, %v1417
    %v1419 = vpop.f32.mrf.mxu0
    %1420 = vdwg.mxu0
    %1421 = vmatprep.subr.bf16.mxu0 0
    %1422 = vmatpush1.bf16.msra.mxu0 %v1022
    %1423 = vmatprep.subr.bf16.mxu0 0
    %1424 = vmatpush1.bf16.msra.mxu0 %v1021
    %1425 = vmatprep.subr.bf16.mxu0 0
    %1426 = vmatpush1.bf16.msra.mxu0 %v1020
    %1427 = vmatprep.subr.bf16.mxu0 0
    %1428 = vmatpush1.bf16.msra.mxu0 %v1019
    %1429 = vmatprep.subr.bf16.mxu0 0
    %1430 = vmatpush1.bf16.msra.mxu0 %v1018
    %1431 = vmatprep.subr.bf16.mxu0 0
    %1432 = vmatpush1.bf16.msra.mxu0 %v1017
    %1433 = vmatprep.subr.bf16.mxu0 0
    %1434 = vmatpush1.bf16.msra.mxu0 %v1016
    %1435 = vmatprep.subr.bf16.mxu0 0
    %1436 = vmatpush1.bf16.msra.mxu0 %v1015
    %1437 = vmatprep.subr.bf16.mxu0 0
    %1438 = vmatpush2.bf16.msra.mxu0 %v1030
    %1439 = vmatprep.subr.bf16.mxu0 0
    %1440 = vmatpush2.bf16.msra.mxu0 %v1029
    %1441 = vmatprep.subr.bf16.mxu0 0
    %1442 = vmatpush2.bf16.msra.mxu0 %v1028
    %1443 = vmatprep.subr.bf16.mxu0 0
    %1444 = vmatpush2.bf16.msra.mxu0 %v1027
    %1445 = vmatprep.subr.bf16.mxu0 0
    %1446 = vmatpush2.bf16.msra.mxu0 %v1026
    %1447 = vmatprep.subr.bf16.mxu0 0
    %1448 = vmatpush2.bf16.msra.mxu0 %v1025
    %1449 = vmatprep.subr.bf16.mxu0 0
    %1450 = vmatpush2.bf16.msra.mxu0 %v1024
    %1451 = vmatprep.subr.bf16.mxu0 0
    %1452 = vmatpush2.bf16.msra.mxu0 %v1023
    %1453 = vmatprep.mubr.bf16.mxu0 %v388
    %1454 = vmatmul.mubr.bf16.gmra.mxu0 %v387
    %v1455 = vpop.f32.mrf.mxu0
    %v1456 = vadd.f32 %v1415, %v1455
    %v1457 = vpop.f32.mrf.mxu0
    %v1458 = vpop.f32.mrf.mxu0
    %v1459 = vadd.f32 %v1418, %v1458
    %v1460 = vpop.f32.mrf.mxu0
    %1461 = vdwg.mxu0
    %1462 = vmatprep.subr.bf16.mxu0 0
    %1463 = vmatpush1.bf16.msra.mxu0 %v1038
    %1464 = vmatprep.subr.bf16.mxu0 0
    %1465 = vmatpush1.bf16.msra.mxu0 %v1037
    %1466 = vmatprep.subr.bf16.mxu0 0
    %1467 = vmatpush1.bf16.msra.mxu0 %v1036
    %1468 = vmatprep.subr.bf16.mxu0 0
    %1469 = vmatpush1.bf16.msra.mxu0 %v1035
    %1470 = vmatprep.subr.bf16.mxu0 0
    %1471 = vmatpush1.bf16.msra.mxu0 %v1034
    %1472 = vmatprep.subr.bf16.mxu0 0
    %1473 = vmatpush1.bf16.msra.mxu0 %v1033
    %1474 = vmatprep.subr.bf16.mxu0 0
    %1475 = vmatpush1.bf16.msra.mxu0 %v1032
    %1476 = vmatprep.subr.bf16.mxu0 0
    %1477 = vmatpush1.bf16.msra.mxu0 %v1031
    %1478 = vmatprep.subr.bf16.mxu0 0
    %1479 = vmatpush2.bf16.msra.mxu0 %v1046
    %1480 = vmatprep.subr.bf16.mxu0 0
    %1481 = vmatpush2.bf16.msra.mxu0 %v1045
    %1482 = vmatprep.subr.bf16.mxu0 0
    %1483 = vmatpush2.bf16.msra.mxu0 %v1044
    %1484 = vmatprep.subr.bf16.mxu0 0
    %1485 = vmatpush2.bf16.msra.mxu0 %v1043
    %1486 = vmatprep.subr.bf16.mxu0 0
    %1487 = vmatpush2.bf16.msra.mxu0 %v1042
    %1488 = vmatprep.subr.bf16.mxu0 0
    %1489 = vmatpush2.bf16.msra.mxu0 %v1041
    %1490 = vmatprep.subr.bf16.mxu0 0
    %1491 = vmatpush2.bf16.msra.mxu0 %v1040
    %1492 = vmatprep.subr.bf16.mxu0 0
    %1493 = vmatpush2.bf16.msra.mxu0 %v1039
    %1494 = vmatprep.mubr.bf16.mxu0 %v390
    %1495 = vmatmul.mubr.bf16.gmra.mxu0 %v389
    %v1496 = vpop.f32.mrf.mxu0
    %v1497 = vadd.f32 %v1456, %v1496
    %v1498 = vpop.f32.mrf.mxu0
    %v1499 = vpop.f32.mrf.mxu0
    %v1500 = vadd.f32 %v1459, %v1499
    %v1501 = vpop.f32.mrf.mxu0
    %1502 = vdwg.mxu0
    %1503 = vadd.xlane.f32.xlu0 %v1497
    %v1504 = vpop.xlane.xlu0 %1503
    %1505 = vadd.xlane.f32.xlu0 %v1500
    %v1506 = vpop.xlane.xlu0 %1505
    %v1507 = vrcp.pop 128.0
    %v1508 = vmul.f32 %v1504, %v1507
    %v1509 = vmul.f32 %v1506, %v1507
    %v1510 = vmul.f32 %v1497, %v1497
    %v1511 = vmul.f32 %v1500, %v1500
    %1512 = vadd.xlane.f32.xlu0 %v1510
    %v1513 = vpop.xlane.xlu0 %1512
    %1514 = vadd.xlane.f32.xlu0 %v1511
    %v1515 = vpop.xlane.xlu0 %1514
    %v1516 = vmul.f32 %v1513, %v1507
    %v1517 = vmul.f32 %v1515, %v1507
    %v1518 = vmul.f32 %v1508, %v1508
    %v1519 = vmul.f32 %v1509, %v1509
    %v1520 = vsub.f32 %v1516, %v1518
    %v1521 = vsub.f32 %v1517, %v1519
    %v1522 = vmax.f32 %v1520, 0.0
    %v1523 = vmax.f32 %v1521, 0.0
    %v1524 = vsub.f32 %v1497, %v1508
    %v1525 = vsub.f32 %v1500, %v1509
    %v1526 = vadd.f32 %v1522, 1e-12
    %v1527 = vadd.f32 %v1523, 1e-12
    %v1528 = vrsqrt.pop %v1526
    %v1529 = vrsqrt.pop %v1527
    %v1530 = vmul.f32 %v1524, %v1528
    %v1531 = vmul.f32 %v1525, %v1529
    %v1532 = vlaneseq
    %v1533 = vshrl.u32 %v1532, 7
    %v1534 = vsub.s32 1, %v1533
    %v1535 = vrot.slane %v50, %v1534
    %v1536 = vmul.f32 %v1530, %v1535
    %v1537 = vmul.f32 %v1531, %v1535
    %v1538 = vlaneseq
    %v1539 = vshrl.u32 %v1538, 7
    %v1540 = vsub.s32 2, %v1539
    %v1541 = vrot.slane %v50, %v1540
    %v1542 = vadd.f32 %v1536, %v1541
    %v1543 = vadd.f32 %v1537, %v1541
    %v1544 = vld [vmem:[%s1] sm:$0xff]
    %v1545 = vld [vmem:[%s1 + $0x8] sm:$0xff]
    %v1546 = vld [vmem:[%s3] sm:$0xf]
    %v1547 = vlaneseq
    %v1548 = vshrl.u32 %v1547, 7
    %v1549 = vsub.s32 3, %v1548
    %v1550 = vrot.slane %v50, %v1549
    %vm1551 = vcmask 31744
    %v1553 = vsel %vm1551, %v1544, 0
    %v1556 = vsel %vm1551, %v1545, 0
    %vm1558 = vcmask 1043456
    %v1560 = vsel %vm1558, %v1546, 0
    %1562 = vmatprep.subr.mxu0 0.0
    %1563 = vmatpush1.msra.mxu0 0.0
    %1564 = vmatprep.subr.mxu0 0.0
    %1565 = vmatpush1.msra.mxu0 0.0
    %1566 = vmatprep.subr.mxu0 0.0
    %1567 = vmatpush1.msra.mxu0 0.0
    %1568 = vmatprep.subr.mxu0 0.0
    %1569 = vmatpush1.msra.mxu0 0.0
    %1570 = vmatprep.subr.mxu0 0.0
    %1571 = vmatpush1.msra.mxu0 0.0
    %1572 = vmatprep.subr.mxu0 0.0
    %1573 = vmatpush1.msra.mxu0 0.0
    %1574 = vmatprep.subr.mxu0 0.0
    %1575 = vmatpush1.msra.mxu0 0.0
    %1576 = vmatprep.subr.mxu0 0.0
    %1577 = vmatpush1.msra.mxu0 0.0
    %1578 = vmatprep.subr.mxu0 0.0
    %1579 = vmatpush1.msra.mxu0 0.0
    %1580 = vmatprep.subr.mxu0 0.0
    %1581 = vmatpush1.msra.mxu0 0.0
    %1582 = vmatprep.subr.mxu0 0.0
    %1583 = vmatpush1.msra.mxu0 0.0
    %1584 = vmatprep.subr.mxu0 0.0
    %1585 = vmatpush1.msra.mxu0 0.0
    %1586 = vmatprep.subr.mxu0 0.0
    %1587 = vmatpush1.msra.mxu0 0.0
    %1588 = vmatprep.subr.mxu0 0.0
    %1589 = vmatpush1.msra.mxu0 0.0
    %1590 = vmatprep.subr.mxu0 0.0
    %1591 = vmatpush1.msra.mxu0 0.0
    %1592 = vmatprep.subr.mxu0 0.0
    %1593 = vmatpush1.msra.mxu0 %v1560
    %1594 = vmatprep.subr.mxu0 0.0
    %1595 = vmatpush2.msra.mxu0 0.0
    %1596 = vmatprep.subr.mxu0 0.0
    %1597 = vmatpush2.msra.mxu0 0.0
    %1598 = vmatprep.subr.mxu0 0.0
    %1599 = vmatpush2.msra.mxu0 0.0
    %1600 = vmatprep.subr.mxu0 0.0
    %1601 = vmatpush2.msra.mxu0 0.0
    %1602 = vmatprep.subr.mxu0 0.0
    %1603 = vmatpush2.msra.mxu0 0.0
    %1604 = vmatprep.subr.mxu0 0.0
    %1605 = vmatpush2.msra.mxu0 0.0
    %1606 = vmatprep.subr.mxu0 0.0
    %1607 = vmatpush2.msra.mxu0 0.0
    %1608 = vmatprep.subr.mxu0 0.0
    %1609 = vmatpush2.msra.mxu0 0.0
    %1610 = vmatprep.subr.mxu0 0.0
    %1611 = vmatpush2.msra.mxu0 0.0
    %1612 = vmatprep.subr.mxu0 0.0
    %1613 = vmatpush2.msra.mxu0 0.0
    %1614 = vmatprep.subr.mxu0 0.0
    %1615 = vmatpush2.msra.mxu0 0.0
    %1616 = vmatprep.subr.mxu0 0.0
    %1617 = vmatpush2.msra.mxu0 0.0
    %1618 = vmatprep.subr.mxu0 0.0
    %1619 = vmatpush2.msra.mxu0 0.0
    %1620 = vmatprep.subr.mxu0 0.0
    %1621 = vmatpush2.msra.mxu0 0.0
    %1622 = vmatprep.subr.mxu0 0.0
    %1623 = vmatpush2.msra.mxu0 0.0
    %1624 = vmatprep.subr.mxu0 0.0
    %1625 = vmatpush2.msra.mxu0 0.0
    %1626 = vmatprep.mubr.f32.mxu0 0.0
    %1627 = vmatmul.mubr.f32.gmra.mxu0 %v1553
    %v1628 = vpop.f32.mrf.mxu0
    %v1629 = vadd.f32 %v1550, %v1628
    %v1630 = vpop.f32.mrf.mxu0
    %1631 = vmatprep.mubr.f32.mxu0 0.0
    %1632 = vmatmul.mubr.f32.gmra.mxu0 %v1556
    %v1633 = vpop.f32.mrf.mxu0
    %v1634 = vadd.f32 %v1550, %v1633
    %v1635 = vpop.f32.mrf.mxu0
    %1636 = vdwg.mxu0
    %1637 = vadd.xlane.f32.xlu0 %v1629
    %v1638 = vpop.xlane.xlu0 %1637
    %1639 = vadd.xlane.f32.xlu0 %v1634
    %v1640 = vpop.xlane.xlu0 %1639
    %v1641 = vmul.f32 %v1638, %v1507
    %v1642 = vmul.f32 %v1640, %v1507
    %v1643 = vmul.f32 %v1629, %v1629
    %v1644 = vmul.f32 %v1634, %v1634
    %1645 = vadd.xlane.f32.xlu0 %v1643
    %v1646 = vpop.xlane.xlu0 %1645
    %1647 = vadd.xlane.f32.xlu0 %v1644
    %v1648 = vpop.xlane.xlu0 %1647
    %v1649 = vmul.f32 %v1646, %v1507
    %v1650 = vmul.f32 %v1648, %v1507
    %v1651 = vmul.f32 %v1641, %v1641
    %v1652 = vmul.f32 %v1642, %v1642
    %v1653 = vsub.f32 %v1649, %v1651
    %v1654 = vsub.f32 %v1650, %v1652
    %v1655 = vmax.f32 %v1653, 0.0
    %v1656 = vmax.f32 %v1654, 0.0
    %v1657 = vsub.f32 %v1629, %v1641
    %v1658 = vsub.f32 %v1634, %v1642
    %v1659 = vadd.f32 %v1655, 1e-12
    %v1660 = vadd.f32 %v1656, 1e-12
    %v1661 = vrsqrt.pop %v1659
    %v1662 = vrsqrt.pop %v1660
    %v1663 = vmul.f32 %v1657, %v1661
    %v1664 = vmul.f32 %v1658, %v1662
    %v1665 = vlaneseq
    %v1666 = vshrl.u32 %v1665, 7
    %v1667 = vsub.s32 4, %v1666
    %v1668 = vrot.slane %v50, %v1667
    %v1669 = vmul.f32 %v1663, %v1668
    %v1670 = vmul.f32 %v1664, %v1668
    %v1671 = vlaneseq
    %v1672 = vshrl.u32 %v1671, 7
    %v1673 = vsub.s32 5, %v1672
    %v1674 = vrot.slane %v50, %v1673
    %v1675 = vadd.f32 %v1669, %v1674
    %v1676 = vadd.f32 %v1670, %v1674
    %v1677 = vadd.f32 %v1542, %v1675
    %v1678 = vadd.f32 %v1543, %v1676
    %v1679 = vmul.f32 %v1677, 0.5
    %v1680 = vmul.f32 %v1678, 0.5
    %1681 = vst [vmem:[#allocation7] sm:$0xff] %v1679
    %1682 = vst [vmem:[#allocation7 + $0x8] sm:$0xff] %v1680
    // Predicated region
    $region30: #{tpu_custom_call.1} parent=1 // pred_check
      _
    $region31: #{tpu_custom_call.1} parent=1 // pred_check_branch
      %1684 = sbr.rel (0) target = $region33
    $region32: #{tpu_custom_call.1} parent=1 // pred_region
      %s1686 = ssub.s32 256, 256
      %1687 = vsyncadd [#allocation4], %s1686
      %s1688 = sshll.u32 [#allocation7], 4
      %s1689 = int_to_ptr.vmem [resolvable:$true] %s1688
      %1694 = dma.vmem_to_hbm [thread:$0]  %s1689, 256, %s5, [#allocation4], 128, 128, 8
    $region33: #{tpu_custom_call.1} parent=1 // pred_fallthru
      _
    // Predicated region
    $region34: #{tpu_custom_call.1} parent=1 // pred_check
      _
    $region35: #{tpu_custom_call.1} parent=1 // pred_check_branch
      %1696 = sbr.rel (0) target = $region37
    $region36: #{tpu_custom_call.1} parent=1 // pred_region
      %1697 = dma.done [#allocation4], 256
    $region37: #{tpu_custom_call.1} parent=1 // pred_fallthru
      _
    %1698 = vsyncpa [#allocation3], 1
    %1699 = vsyncpa [#allocation6], 1
    %1700 = vsyncpa [#allocation4], 1

</llo_original>
